<compile_context>
chip_gen: v6e
topology: v6e:2x2x1
jax: 0.10.0
libtpu: 0.0.40
codegen_flags: <defaults>
</compile_context>

<pallas_src>
import functools

import jax
import jax.numpy as jnp
from jax import lax
from jax.experimental import pallas as pl
from jax.experimental.pallas import tpu as pltpu


def _round_up(x, m):
    return ((x + m - 1) // m) * m


def _sentence_attention_kernel(
    s_hx_ref, enc_out_ref, enc_feat_ref, cov_ref, mask_ref,
    ws_w_ref, lin_ws_ref, v_w_ref, wc_w_ref, attn_b_ref, lin_wc_ref, lin_b_ref,
    final_ref, align_ref, next_cov_ref,
    *, t_valid,
):
    """One grid step: a block of s_blk independent decode steps, batch-major.

    Per-block shapes:
      s_hx_ref      (b, s_blk, n)
      enc_out_ref   (b, t_pad, n)   resident across the grid, possibly bf16
      enc_feat_ref  (b, t_pad, n)   resident across the grid, possibly bf16
      cov/mask      (b, s_blk, t_pad)
      outputs       final (b, s_blk, n), align/next_cov (b, s_blk, t_pad)
    """
    b, s_blk, n = s_hx_ref.shape
    t_pad = cov_ref.shape[-1]
    m = b * s_blk

    # --- decoder-state projections: two (m, n) x (n, n) MXU dots ------------
    # Two separate dots (not a fused (n, 2n) weight): slicing the fused result
    # at a non-128-lane boundary would force a relayout at small n.
    s_hx = s_hx_ref[...].reshape(m, n)
    dec_feat = jnp.dot(s_hx, ws_w_ref[...], preferred_element_type=jnp.float32)
    state_term = jnp.dot(s_hx, lin_ws_ref[...], preferred_element_type=jnp.float32)

    cov = cov_ref[...]                                    # (b, s_blk, t_pad)
    mask = mask_ref[...]

    # --- attention energies (elementwise kept in f32: safe on v5e too) ------
    enc_feat = enc_feat_ref[...].astype(jnp.float32)      # upcast once if bf16
    attn = (enc_feat[:, None, :, :]
            + dec_feat.reshape(b, s_blk, 1, n)
            + cov[..., None] * wc_w_ref[...].reshape(1, 1, 1, n)
            + attn_b_ref[...].reshape(1, 1, 1, n))        # ws_b + wc_b pre-folded
    e = jnp.tanh(attn)                                    # (b, s_blk, t_pad, n)

    # scores = v(e): VPU multiply + lane reduce over hidden.
    # (v bias dropped: softmax is shift-invariant, so it cannot change outputs.)
    scores = jnp.sum(e * v_w_ref[...].reshape(1, 1, 1, n), axis=-1)  # (b, s_blk, t_pad)

    # Padded time positions must not take part in the softmax.
    if t_pad != t_valid:
        lane = lax.broadcasted_iota(jnp.int32, scores.shape, 2)
        scores = jnp.where(lane < t_valid, scores, -jnp.inf)

    # Softmax over time (lane axis), masked afterwards without renormalization,
    # exactly like the PyTorch forward.  Exact reciprocal: the EUP is not the
    # bottleneck here and it keeps tolerances tight.
    mmax = jnp.max(scores, axis=-1, keepdims=True)
    ex = jnp.exp(scores - mmax)
    denom = jnp.sum(ex, axis=-1, keepdims=True)
    align = ex * pl.reciprocal(denom, approx=False) * mask           # (b, s_blk, t_pad)

    next_cov = cov + align

    # --- content vector on the MXU: canonical batched matmul over b ---------
    enc_out = enc_out_ref[...]
    content = jnp.einsum("bst,btn->bsn", align.astype(enc_out.dtype), enc_out,
                         preferred_element_type=jnp.float32)         # (b, s_blk, n)

    # final_dist = tanh(Linear([content, s_hx])); the s_hx half was already
    # projected above (state_term).
    final = jnp.tanh(
        jnp.dot(content.reshape(m, n), lin_wc_ref[...],
                preferred_element_type=jnp.float32)
        + state_term + lin_b_ref[...])

    final_ref[...] = final.reshape(b, s_blk, n)
    align_ref[...] = align
    next_cov_ref[...] = next_cov


def _prepare_params(params, n):
    """Wrapper-side weight prep: split Linear(2n, n), fold ws_b + wc_b, drop v_b."""
    lin_w = params["lin_w"]                         # (2n, n): rows [:n]=content, [n:]=s_hx
    return dict(
        ws_w=params["ws_w"],                        # (n, n)
        lin_w_state=lin_w[n:, :],                   # (n, n)
        lin_w_content=lin_w[:n, :],                 # (n, n)
        v_w=params["v_w"],                          # (1, n)
        wc_w=params["wc_w"],                        # (1, n)
        attn_bias=params["ws_b"] + params["wc_b"],  # (1, n) folded bias
        lin_b=params["lin_b"],                      # (1, n)
    )


@functools.partial(jax.jit, static_argnames=("s_block", "enc_dtype"))
def sentence_attention_steps(s_hx, encoder_outputs, encoder_feature,
                             coverage_vector, sentence_mask, params,
                             *, s_block=8, enc_dtype=jnp.float32):
    """S independent attention evaluations sharing the same encoder outputs.

    s_hx:            (S, b, n)
    encoder_outputs: (t, b, n)       (shared across steps)
    encoder_feature: (t, b, n)
    coverage_vector: (S, t, b, 1)
    sentence_mask:   (S, t, b, 1)
    Returns: final (S, b, n), align (S, t, b, 1), next_coverage (S, t, b, 1).
    """
    t, b, n = encoder_outputs.shape
    S = s_hx.shape[0]
    f32 = jnp.float32

    # S blocking: the MXU dots see M = b * s_blk rows and the per-grid-step
    # overhead is amortized over a whole block of decode steps.
    if S <= s_block:
        s_blk = S                       # one block == full axis (any size is legal)
    else:
        s_blk = _round_up(s_block, 8)   # keep the blocked (sublane) dim 8-aligned
    S_pad = _round_up(S, s_blk)
    t_pad = _round_up(t, 128)           # lane-dense align/next_cov stores + softmax lanes
    grid = (S_pad // s_blk,)

    kp = _prepare_params(params, n)

    # ---- layout plumbing (XLA side): batch-major, time on lanes ------------
    # TODO(synk): cache the two encoder transposes across decode steps (they are
    # step-invariant) and let downstream consume (b, S, t) directly to skip the
    # output transposes.
    enc_out_b = jnp.transpose(encoder_outputs, (1, 0, 2)).astype(enc_dtype)    # (b, t, n)
    enc_feat_b = jnp.transpose(encoder_feature, (1, 0, 2)).astype(enc_dtype)   # (b, t, n)
    s_hx_b = jnp.transpose(s_hx.astype(f32), (1, 0, 2))                        # (b, S, n)
    cov_b = jnp.transpose(coverage_vector.reshape(S, t, b).astype(f32), (2, 0, 1))   # (b, S, t)
    mask_b = jnp.transpose(sentence_mask.reshape(S, t, b).astype(f32), (2, 0, 1))    # (b, S, t)

    if t_pad != t:
        enc_out_b = jnp.pad(enc_out_b, ((0, 0), (0, t_pad - t), (0, 0)))
        enc_feat_b = jnp.pad(enc_feat_b, ((0, 0), (0, t_pad - t), (0, 0)))
        cov_b = jnp.pad(cov_b, ((0, 0), (0, 0), (0, t_pad - t)))
        mask_b = jnp.pad(mask_b, ((0, 0), (0, 0), (0, t_pad - t)))
    if S_pad != S:
        s_hx_b = jnp.pad(s_hx_b, ((0, 0), (0, S_pad - S), (0, 0)))
        cov_b = jnp.pad(cov_b, ((0, 0), (0, S_pad - S), (0, 0)))
        mask_b = jnp.pad(mask_b, ((0, 0), (0, S_pad - S), (0, 0)))

    idx_step = lambda s: (0, s, 0)

    def _resident_spec(shape):
        # Grid-invariant resident slabs: single-buffer them (double-buffering a
        # constant-index input only burns VMEM -- matters on v7x's 64 MiB).
        try:
            return pl.BlockSpec(shape, lambda s: (0, 0, 0),
                                pipeline_mode=pl.Buffered(1))
        except Exception:  # pragma: no cover - fall back if unsupported
            return pl.BlockSpec(shape, lambda s: (0, 0, 0))

    def w_spec(shape):
        return pl.BlockSpec(shape, lambda s: (0, 0))

    in_specs = [
        pl.BlockSpec((b, s_blk, n), idx_step),        # s_hx
        _resident_spec((b, t_pad, n)),                # encoder_outputs (resident)
        _resident_spec((b, t_pad, n)),                # encoder_feature (resident)
        pl.BlockSpec((b, s_blk, t_pad), idx_step),    # coverage
        pl.BlockSpec((b, s_blk, t_pad), idx_step),    # sentence mask
        w_spec((n, n)),                               # W_s
        w_spec((n, n)),                               # linear (s_hx half)
        w_spec((1, n)),                               # v
        w_spec((1, n)),                               # W_c
        w_spec((1, n)),                               # ws_b + wc_b (folded)
        w_spec((n, n)),                               # linear (content half)
        w_spec((1, n)),                               # linear bias
    ]
    out_specs = (
        pl.BlockSpec((b, s_blk, n), idx_step),        # final
        pl.BlockSpec((b, s_blk, t_pad), idx_step),    # align
        pl.BlockSpec((b, s_blk, t_pad), idx_step),    # next coverage
    )

    # Explicit scoped-VMEM budget: 1x resident encoder slabs + 2x (pipelined)
    # per-step blocks + weights + elementwise temporaries, with headroom.
    esz = jnp.dtype(enc_dtype).itemsize
    enc_bytes = 2 * b * t_pad * n * esz
    step_bytes = 2 * (b * s_blk * (2 * n + 4 * t_pad) * 4)
    w_bytes = 2 * (3 * n * n + 4 * n) * 4
    tmp_bytes = 4 * b * s_blk * t_pad * n * 4
    vmem_limit = int(min(max(2 * (enc_bytes + step_bytes + w_bytes + tmp_bytes),
                             32 << 20), 64 << 20))

    grid_spec = pltpu.PrefetchScalarGridSpec(
        num_scalar_prefetch=0, grid=grid, in_specs=in_specs, out_specs=out_specs)

    kernel = functools.partial(_sentence_attention_kernel, t_valid=t)

    final_b, align_b, next_cov_b = pl.pallas_call(
        kernel,
        out_shape=(
            jax.ShapeDtypeStruct((b, S_pad, n), f32),
            jax.ShapeDtypeStruct((b, S_pad, t_pad), f32),
            jax.ShapeDtypeStruct((b, S_pad, t_pad), f32),
        ),
        grid_spec=grid_spec,
        compiler_params=pltpu.CompilerParams(
            dimension_semantics=("arbitrary",),
            vmem_limit_bytes=vmem_limit),
    )(s_hx_b, enc_out_b, enc_feat_b, cov_b, mask_b,
      kp["ws_w"], kp["lin_w_state"], kp["v_w"], kp["wc_w"],
      kp["attn_bias"], kp["lin_w_content"], kp["lin_b"])

    # Back to the PyTorch layouts (and strip the S / t padding).
    final = jnp.transpose(final_b, (1, 0, 2))[:S]                      # (S, b, n)
    align = jnp.transpose(align_b, (1, 2, 0))[:S, :t, :, None]         # (S, t, b, 1)
    next_cov = jnp.transpose(next_cov_b, (1, 2, 0))[:S, :t, :, None]   # (S, t, b, 1)
    return final, align, next_cov


def sentence_attention(s_hx, encoder_outputs, encoder_feature,
                       coverage_vector, sentence_mask, params):
    """Module-faithful single step (coverage enabled), PyTorch layouts."""
    final, align, next_cov = sentence_attention_steps(
        s_hx[None], encoder_outputs, encoder_feature,
        coverage_vector[None], sentence_mask[None], params)
    return final[0], align[0], next_cov[0]


def reference(s_hx, encoder_outputs, encoder_feature,
              coverage_vector, sentence_mask, params):
    """Pure-JAX reference mirroring the PyTorch forward (coverage enabled)."""
    t, b, n = encoder_outputs.shape
    dec_feat = s_hx @ params["ws_w"] + params["ws_b"]
    attn = encoder_feature + dec_feat[None, :, :]
    cov = coverage_vector.reshape(t, b)
    cov_feat = cov[:, :, None] * params["wc_w"][None, :, :] + params["wc_b"][None, :, :]
    attn = attn + cov_feat
    e = jnp.tanh(attn)
    scores = jnp.sum(e * params["v_w"][None, :, :], axis=-1) + params["v_b"]
    align = jax.nn.softmax(scores, axis=0) * sentence_mask.reshape(t, b)
    next_cov = cov + align
    content = jnp.sum(align[:, :, None] * encoder_outputs, axis=0)
    concat = jnp.concatenate([content, s_hx], axis=1)
    final = jnp.tanh(concat @ params["lin_w"] + params["lin_b"])
    return final, align.reshape(t, b, 1), next_cov.reshape(t, b, 1)


if __name__ == "__main__":
    HIDDEN = 32
    T_K = 8
    B = 4

    key = jax.random.PRNGKey(0)
    keys = jax.random.split(key, 16)

    # Weights stored pre-transposed as (in, out) so y = x @ W + b matches nn.Linear.
    params = {
        "ws_w": jax.random.normal(keys[0], (HIDDEN, HIDDEN), jnp.float32) * 0.1,
        "ws_b": jax.random.normal(keys[1], (1, HIDDEN), jnp.float32) * 0.1,
        "v_w": jax.random.normal(keys[2], (1, HIDDEN), jnp.float32) * 0.1,
        "v_b": jax.random.normal(keys[3], (1, 1), jnp.float32) * 0.1,   # reference only
        "wc_w": jax.random.normal(keys[4], (1, HIDDEN), jnp.float32) * 0.1,  # Linear(1, hidden)
        "wc_b": jax.random.normal(keys[5], (1, HIDDEN), jnp.float32) * 0.1,
        "lin_w": jax.random.normal(keys[6], (2 * HIDDEN, HIDDEN), jnp.float32) * 0.1,
        "lin_b": jax.random.normal(keys[7], (1, HIDDEN), jnp.float32) * 0.1,
    }

    s_hx = jax.random.normal(keys[8], (B, HIDDEN), jnp.float32)
    encoder_outputs = jax.random.normal(keys[9], (T_K, B, HIDDEN), jnp.float32)
    encoder_feature = jax.random.normal(keys[10], (T_K, B, HIDDEN), jnp.float32)
    coverage_vector = jnp.zeros((T_K, B, 1), jnp.float32)
    sentence_mask = (jax.random.uniform(keys[11], (T_K, B, 1)) > 0.2).astype(jnp.float32)

    TOL = dict(atol=1e-3, rtol=1e-3)   # exact reciprocal -> tight tolerances

    # --- module-faithful single step (S = 1, grid = 1) ----------------------
    final, align, next_cov = sentence_attention(
        s_hx, encoder_outputs, encoder_feature, coverage_vector, sentence_mask, params)
    jax.block_until_ready((final, align, next_cov))

    ref_final, ref_align, ref_cov = reference(
        s_hx, encoder_outputs, encoder_feature, coverage_vector, sentence_mask, params)
    assert jnp.allclose(final, ref_final, **TOL)
    assert jnp.allclose(align, ref_align, **TOL)
    assert jnp.allclose(next_cov, ref_cov, **TOL)

    # --- blocked steps (S = 11 > s_block -> S padding, 2 grid steps) --------
    S = 11
    s_hx_s = jax.random.normal(keys[12], (S, B, HIDDEN), jnp.float32)
    cov_s = jax.random.uniform(keys[13], (S, T_K, B, 1), jnp.float32)
    mask_s = (jax.random.uniform(keys[14], (S, T_K, B, 1)) > 0.2).astype(jnp.float32)

    f_s, a_s, c_s = sentence_attention_steps(
        s_hx_s, encoder_outputs, encoder_feature, cov_s, mask_s, params, s_block=8)
    jax.block_until_ready((f_s, a_s, c_s))

    for s in range(S):
        rf, ra, rc = reference(s_hx_s[s], encoder_outputs, encoder_feature,
                               cov_s[s], mask_s[s], params)
        assert jnp.allclose(f_s[s], rf, **TOL)
        assert jnp.allclose(a_s[s], ra, **TOL)
        assert jnp.allclose(c_s[s], rc, **TOL)

    # --- bf16 resident-encoder storage (halves DMA/VMEM of the big slabs) ---
    f16, a16, c16 = sentence_attention_steps(
        s_hx_s, encoder_outputs, encoder_feature, cov_s, mask_s, params,
        s_block=8, enc_dtype=jnp.bfloat16)
    jax.block_until_ready((f16, a16, c16))
    assert jnp.allclose(f16, f_s, atol=1e-1, rtol=1e-1)
    assert jnp.allclose(a16, a_s, atol=1e-1, rtol=1e-1)
    assert jnp.allclose(c16, c_s, atol=1e-1, rtol=1e-1)

    print("KERNEL_OK")
</pallas_src>

<mosaic_0001>
module attributes {stable_mosaic.version = 11 : i64} {
  func.func @_sentence_attention_kernel(%arg0: i32, %arg1: memref<4x1x32xf32, #tpu.memory_space<vmem>>, %arg2: memref<4x128x32xf32, #tpu.memory_space<vmem>>, %arg3: memref<4x128x32xf32, #tpu.memory_space<vmem>>, %arg4: memref<4x1x128xf32, #tpu.memory_space<vmem>>, %arg5: memref<4x1x128xf32, #tpu.memory_space<vmem>>, %arg6: memref<32x32xf32, #tpu.memory_space<vmem>>, %arg7: memref<32x32xf32, #tpu.memory_space<vmem>>, %arg8: memref<1x32xf32, #tpu.memory_space<vmem>>, %arg9: memref<1x32xf32, #tpu.memory_space<vmem>>, %arg10: memref<1x32xf32, #tpu.memory_space<vmem>>, %arg11: memref<32x32xf32, #tpu.memory_space<vmem>>, %arg12: memref<1x32xf32, #tpu.memory_space<vmem>>, %arg13: memref<4x1x32xf32, #tpu.memory_space<vmem>>, %arg14: memref<4x1x128xf32, #tpu.memory_space<vmem>>, %arg15: memref<4x1x128xf32, #tpu.memory_space<vmem>>) attributes {dimension_semantics = [#tpu.dimension_semantics<arbitrary>], iteration_bounds = array<i64: 1>, scalar_prefetch = 0 : i64, scratch_operands = 0 : i64, tpu.core_type = #tpu.core_type<tc>, window_params = [{transform_indices = @transform_0, window_bounds = array<i64: 4, 1, 32>}, {pipeline_mode = #tpu.pipeline_mode<synchronous>, transform_indices = @transform_1, window_bounds = array<i64: 4, 128, 32>}, {pipeline_mode = #tpu.pipeline_mode<synchronous>, transform_indices = @transform_2, window_bounds = array<i64: 4, 128, 32>}, {transform_indices = @transform_3, window_bounds = array<i64: 4, 1, 128>}, {transform_indices = @transform_4, window_bounds = array<i64: 4, 1, 128>}, {pipeline_mode = #tpu.pipeline_mode<synchronous>, transform_indices = @transform_5, window_bounds = array<i64: 32, 32>}, {pipeline_mode = #tpu.pipeline_mode<synchronous>, transform_indices = @transform_6, window_bounds = array<i64: 32, 32>}, {pipeline_mode = #tpu.pipeline_mode<synchronous>, transform_indices = @transform_7, window_bounds = array<i64: 1, 32>}, {pipeline_mode = #tpu.pipeline_mode<synchronous>, transform_indices = @transform_8, window_bounds = array<i64: 1, 32>}, {pipeline_mode = #tpu.pipeline_mode<synchronous>, transform_indices = @transform_9, window_bounds = array<i64: 1, 32>}, {pipeline_mode = #tpu.pipeline_mode<synchronous>, transform_indices = @transform_10, window_bounds = array<i64: 32, 32>}, {pipeline_mode = #tpu.pipeline_mode<synchronous>, transform_indices = @transform_11, window_bounds = array<i64: 1, 32>}, {transform_indices = @transform_12, window_bounds = array<i64: 4, 1, 32>}, {transform_indices = @transform_13, window_bounds = array<i64: 4, 1, 128>}, {transform_indices = @transform_14, window_bounds = array<i64: 4, 1, 128>}]} {
    %c0 = arith.constant 0 : index
    %c0_0 = arith.constant 0 : index
    %c0_1 = arith.constant 0 : index
    %0 = vector.load %arg1[%c0, %c0_0, %c0_1] : memref<4x1x32xf32, #tpu.memory_space<vmem>>, vector<4x1x32xf32>
    %1 = vector.shape_cast %0 : vector<4x1x32xf32> to vector<4x32xf32>
    %c0_2 = arith.constant 0 : index
    %c0_3 = arith.constant 0 : index
    %2 = vector.load %arg6[%c0_2, %c0_3] : memref<32x32xf32, #tpu.memory_space<vmem>>, vector<32x32xf32>
    %cst = arith.constant dense<0.000000e+00> : vector<4x32xf32>
    %3 = tpu.matmul %1, %2, %cst {dimension_numbers = #tpu.dot_dimension_numbers<[1], [0], [0], [1], [0, 0, 1, 1], [], []>} : vector<4x32xf32>, vector<32x32xf32>, vector<4x32xf32> -> vector<4x32xf32>
    %c0_4 = arith.constant 0 : index
    %c0_5 = arith.constant 0 : index
    %4 = vector.load %arg7[%c0_4, %c0_5] : memref<32x32xf32, #tpu.memory_space<vmem>>, vector<32x32xf32>
    %cst_6 = arith.constant dense<0.000000e+00> : vector<4x32xf32>
    %5 = tpu.matmul %1, %4, %cst_6 {dimension_numbers = #tpu.dot_dimension_numbers<[1], [0], [0], [1], [0, 0, 1, 1], [], []>} : vector<4x32xf32>, vector<32x32xf32>, vector<4x32xf32> -> vector<4x32xf32>
    %c0_7 = arith.constant 0 : index
    %c0_8 = arith.constant 0 : index
    %c0_9 = arith.constant 0 : index
    %6 = vector.load %arg4[%c0_7, %c0_8, %c0_9] : memref<4x1x128xf32, #tpu.memory_space<vmem>>, vector<4x1x128xf32>
    %c0_10 = arith.constant 0 : index
    %c0_11 = arith.constant 0 : index
    %c0_12 = arith.constant 0 : index
    %7 = vector.load %arg5[%c0_10, %c0_11, %c0_12] : memref<4x1x128xf32, #tpu.memory_space<vmem>>, vector<4x1x128xf32>
    %c0_13 = arith.constant 0 : index
    %c0_14 = arith.constant 0 : index
    %c0_15 = arith.constant 0 : index
    %8 = vector.load %arg3[%c0_13, %c0_14, %c0_15] : memref<4x128x32xf32, #tpu.memory_space<vmem>>, vector<4x128x32xf32>
    %9 = vector.shape_cast %8 : vector<4x128x32xf32> to vector<4x1x128x32xf32>
    %10 = vector.shape_cast %3 : vector<4x32xf32> to vector<4x1x1x32xf32>
    %11 = vector.broadcast %10 : vector<4x1x1x32xf32> to vector<4x1x128x32xf32>
    %12 = arith.addf %9, %11 : vector<4x1x128x32xf32>
    %13 = vector.shape_cast %6 : vector<4x1x128xf32> to vector<4x1x128x1xf32>
    %c0_16 = arith.constant 0 : index
    %c0_17 = arith.constant 0 : index
    %14 = vector.load %arg9[%c0_16, %c0_17] : memref<1x32xf32, #tpu.memory_space<vmem>>, vector<1x32xf32>
    %15 = vector.shape_cast %14 : vector<1x32xf32> to vector<1x1x1x32xf32>
    %16 = vector.broadcast %13 : vector<4x1x128x1xf32> to vector<4x1x128x32xf32>
    %17 = vector.broadcast %15 : vector<1x1x1x32xf32> to vector<4x1x128x32xf32>
    %18 = arith.mulf %16, %17 : vector<4x1x128x32xf32>
    %19 = arith.addf %12, %18 : vector<4x1x128x32xf32>
    %c0_18 = arith.constant 0 : index
    %c0_19 = arith.constant 0 : index
    %20 = vector.load %arg10[%c0_18, %c0_19] : memref<1x32xf32, #tpu.memory_space<vmem>>, vector<1x32xf32>
    %21 = vector.shape_cast %20 : vector<1x32xf32> to vector<1x1x1x32xf32>
    %22 = vector.broadcast %21 : vector<1x1x1x32xf32> to vector<4x1x128x32xf32>
    %23 = arith.addf %19, %22 : vector<4x1x128x32xf32>
    %24 = math.tanh %23 : vector<4x1x128x32xf32>
    %c0_20 = arith.constant 0 : index
    %c0_21 = arith.constant 0 : index
    %25 = vector.load %arg8[%c0_20, %c0_21] : memref<1x32xf32, #tpu.memory_space<vmem>>, vector<1x32xf32>
    %26 = vector.shape_cast %25 : vector<1x32xf32> to vector<1x1x1x32xf32>
    %27 = vector.broadcast %26 : vector<1x1x1x32xf32> to vector<4x1x128x32xf32>
    %28 = arith.mulf %24, %27 : vector<4x1x128x32xf32>
    %cst_22 = arith.constant dense<0.000000e+00> : vector<4x1x128xf32>
    %29 = vector.multi_reduction <add>, %28, %cst_22 [3] : vector<4x1x128x32xf32> to vector<4x1x128xf32>
    %30 = tpu.iota {dimensions = array<i32: 2>} : vector<4x1x128xi32>
    %c8_i32 = arith.constant 8 : i32
    %31 = vector.broadcast %c8_i32 : i32 to vector<4x1x128xi32>
    %32 = arith.cmpi slt, %30, %31 : vector<4x1x128xi32>
    %cst_23 = arith.constant 0xFF800000 : f32
    %33 = vector.broadcast %cst_23 : f32 to vector<4x1x128xf32>
    %34 = arith.select %32, %29, %33 : vector<4x1x128xi1>, vector<4x1x128xf32>
    %cst_24 = arith.constant dense<0xFF800000> : vector<4x1xf32>
    %35 = vector.multi_reduction <maximumf>, %34, %cst_24 [2] : vector<4x1x128xf32> to vector<4x1xf32>
    %36 = vector.shape_cast %35 : vector<4x1xf32> to vector<4x1x1xf32>
    %37 = vector.broadcast %36 : vector<4x1x1xf32> to vector<4x1x128xf32>
    %38 = arith.subf %34, %37 : vector<4x1x128xf32>
    %39 = math.exp %38 : vector<4x1x128xf32>
    %cst_25 = arith.constant dense<0.000000e+00> : vector<4x1xf32>
    %40 = vector.multi_reduction <add>, %39, %cst_25 [2] : vector<4x1x128xf32> to vector<4x1xf32>
    %41 = vector.shape_cast %40 : vector<4x1xf32> to vector<4x1x1xf32>
    %42 = tpu.reciprocal %41 : vector<4x1x1xf32> -> vector<4x1x1xf32>
    %43 = vector.broadcast %42 : vector<4x1x1xf32> to vector<4x1x128xf32>
    %44 = arith.mulf %39, %43 : vector<4x1x128xf32>
    %45 = arith.mulf %44, %7 : vector<4x1x128xf32>
    %46 = arith.addf %6, %45 : vector<4x1x128xf32>
    %c0_26 = arith.constant 0 : index
    %c0_27 = arith.constant 0 : index
    %c0_28 = arith.constant 0 : index
    %47 = vector.load %arg2[%c0_26, %c0_27, %c0_28] : memref<4x128x32xf32, #tpu.memory_space<vmem>>, vector<4x128x32xf32>
    "tpu.trace_start"() <{level = 10 : i32, message = "bst,btn->bsn"}> : () -> ()
    %cst_29 = arith.constant dense<0.000000e+00> : vector<4x1x32xf32>
    %48 = tpu.matmul %45, %47, %cst_29 {dimension_numbers = #tpu.dot_dimension_numbers<[2], [1], [1], [2], [0, 0, 0, 1, 1, 2], [0], [0]>} : vector<4x1x128xf32>, vector<4x128x32xf32>, vector<4x1x32xf32> -> vector<4x1x32xf32>
    "tpu.trace_stop"() : () -> ()
    %49 = vector.shape_cast %48 : vector<4x1x32xf32> to vector<4x32xf32>
    %c0_30 = arith.constant 0 : index
    %c0_31 = arith.constant 0 : index
    %50 = vector.load %arg11[%c0_30, %c0_31] : memref<32x32xf32, #tpu.memory_space<vmem>>, vector<32x32xf32>
    %cst_32 = arith.constant dense<0.000000e+00> : vector<4x32xf32>
    %51 = tpu.matmul %49, %50, %cst_32 {dimension_numbers = #tpu.dot_dimension_numbers<[1], [0], [0], [1], [0, 0, 1, 1], [], []>} : vector<4x32xf32>, vector<32x32xf32>, vector<4x32xf32> -> vector<4x32xf32>
    %52 = arith.addf %51, %5 : vector<4x32xf32>
    %c0_33 = arith.constant 0 : index
    %c0_34 = arith.constant 0 : index
    %53 = vector.load %arg12[%c0_33, %c0_34] : memref<1x32xf32, #tpu.memory_space<vmem>>, vector<1x32xf32>
    %54 = vector.broadcast %53 : vector<1x32xf32> to vector<4x32xf32>
    %55 = arith.addf %52, %54 : vector<4x32xf32>
    %56 = math.tanh %55 : vector<4x32xf32>
    %57 = vector.shape_cast %56 : vector<4x32xf32> to vector<4x1x32xf32>
    %c0_35 = arith.constant 0 : index
    %c0_36 = arith.constant 0 : index
    %c0_37 = arith.constant 0 : index
    %58 = vector.load %arg13[%c0_35, %c0_36, %c0_37] : memref<4x1x32xf32, #tpu.memory_space<vmem>>, vector<4x1x32xf32>
    tpu.vector_store %arg13[%c0_35, %c0_36, %c0_37], %57 {strides = array<i32>} : memref<4x1x32xf32, #tpu.memory_space<vmem>>, vector<4x1x32xf32>,
    %c0_38 = arith.constant 0 : index
    %c0_39 = arith.constant 0 : index
    %c0_40 = arith.constant 0 : index
    %59 = vector.load %arg14[%c0_38, %c0_39, %c0_40] : memref<4x1x128xf32, #tpu.memory_space<vmem>>, vector<4x1x128xf32>
    tpu.vector_store %arg14[%c0_38, %c0_39, %c0_40], %45 {strides = array<i32>} : memref<4x1x128xf32, #tpu.memory_space<vmem>>, vector<4x1x128xf32>,
    %c0_41 = arith.constant 0 : index
    %c0_42 = arith.constant 0 : index
    %c0_43 = arith.constant 0 : index
    %60 = vector.load %arg15[%c0_41, %c0_42, %c0_43] : memref<4x1x128xf32, #tpu.memory_space<vmem>>, vector<4x1x128xf32>
    tpu.vector_store %arg15[%c0_41, %c0_42, %c0_43], %46 {strides = array<i32>} : memref<4x1x128xf32, #tpu.memory_space<vmem>>, vector<4x1x128xf32>,
    return
  }
  func.func @transform_0(%arg0: i32) -> (i32, i32, i32) {
    %c0_i32 = arith.constant 0 : i32
    %c0_i32_0 = arith.constant 0 : i32
    %c0_i32_1 = arith.constant 0 : i32
    return %c0_i32, %arg0, %c0_i32_0 : i32, i32, i32
  }
  func.func @transform_1(%arg0: i32) -> (i32, i32, i32) {
    %c0_i32 = arith.constant 0 : i32
    %c0_i32_0 = arith.constant 0 : i32
    %c0_i32_1 = arith.constant 0 : i32
    %c0_i32_2 = arith.constant 0 : i32
    return %c0_i32, %c0_i32_0, %c0_i32_1 : i32, i32, i32
  }
  func.func @transform_2(%arg0: i32) -> (i32, i32, i32) {
    %c0_i32 = arith.constant 0 : i32
    %c0_i32_0 = arith.constant 0 : i32
    %c0_i32_1 = arith.constant 0 : i32
    %c0_i32_2 = arith.constant 0 : i32
    return %c0_i32, %c0_i32_0, %c0_i32_1 : i32, i32, i32
  }
  func.func @transform_3(%arg0: i32) -> (i32, i32, i32) {
    %c0_i32 = arith.constant 0 : i32
    %c0_i32_0 = arith.constant 0 : i32
    %c0_i32_1 = arith.constant 0 : i32
    return %c0_i32, %arg0, %c0_i32_0 : i32, i32, i32
  }
  func.func @transform_4(%arg0: i32) -> (i32, i32, i32) {
    %c0_i32 = arith.constant 0 : i32
    %c0_i32_0 = arith.constant 0 : i32
    %c0_i32_1 = arith.constant 0 : i32
    return %c0_i32, %arg0, %c0_i32_0 : i32, i32, i32
  }
  func.func @transform_5(%arg0: i32) -> (i32, i32) {
    %c0_i32 = arith.constant 0 : i32
    %c0_i32_0 = arith.constant 0 : i32
    %c0_i32_1 = arith.constant 0 : i32
    return %c0_i32, %c0_i32_0 : i32, i32
  }
  func.func @transform_6(%arg0: i32) -> (i32, i32) {
    %c0_i32 = arith.constant 0 : i32
    %c0_i32_0 = arith.constant 0 : i32
    %c0_i32_1 = arith.constant 0 : i32
    return %c0_i32, %c0_i32_0 : i32, i32
  }
  func.func @transform_7(%arg0: i32) -> (i32, i32) {
    %c0_i32 = arith.constant 0 : i32
    %c0_i32_0 = arith.constant 0 : i32
    %c0_i32_1 = arith.constant 0 : i32
    return %c0_i32, %c0_i32_0 : i32, i32
  }
  func.func @transform_8(%arg0: i32) -> (i32, i32) {
    %c0_i32 = arith.constant 0 : i32
    %c0_i32_0 = arith.constant 0 : i32
    %c0_i32_1 = arith.constant 0 : i32
    return %c0_i32, %c0_i32_0 : i32, i32
  }
  func.func @transform_9(%arg0: i32) -> (i32, i32) {
    %c0_i32 = arith.constant 0 : i32
    %c0_i32_0 = arith.constant 0 : i32
    %c0_i32_1 = arith.constant 0 : i32
    return %c0_i32, %c0_i32_0 : i32, i32
  }
  func.func @transform_10(%arg0: i32) -> (i32, i32) {
    %c0_i32 = arith.constant 0 : i32
    %c0_i32_0 = arith.constant 0 : i32
    %c0_i32_1 = arith.constant 0 : i32
    return %c0_i32, %c0_i32_0 : i32, i32
  }
  func.func @transform_11(%arg0: i32) -> (i32, i32) {
    %c0_i32 = arith.constant 0 : i32
    %c0_i32_0 = arith.constant 0 : i32
    %c0_i32_1 = arith.constant 0 : i32
    return %c0_i32, %c0_i32_0 : i32, i32
  }
  func.func @transform_12(%arg0: i32) -> (i32, i32, i32) {
    %c0_i32 = arith.constant 0 : i32
    %c0_i32_0 = arith.constant 0 : i32
    %c0_i32_1 = arith.constant 0 : i32
    return %c0_i32, %arg0, %c0_i32_0 : i32, i32, i32
  }
  func.func @transform_13(%arg0: i32) -> (i32, i32, i32) {
    %c0_i32 = arith.constant 0 : i32
    %c0_i32_0 = arith.constant 0 : i32
    %c0_i32_1 = arith.constant 0 : i32
    return %c0_i32, %arg0, %c0_i32_0 : i32, i32, i32
  }
  func.func @transform_14(%arg0: i32) -> (i32, i32, i32) {
    %c0_i32 = arith.constant 0 : i32
    %c0_i32_0 = arith.constant 0 : i32
    %c0_i32_1 = arith.constant 0 : i32
    return %c0_i32, %arg0, %c0_i32_0 : i32, i32, i32
  }
}

</mosaic_0001>

<llo_original>
// kernel: sentence_attention_steps.1
$region0: #{sentence_attention_steps.1}
  #allocation0 [shape = 'u32[]', space=smem, size = 0x4, offset = 0x4, fixed_abs, tag = 'smem constant byte address 0x4 - core index']
  #allocation1 [shape = 'u32[144,128]{1,0:T(1,128)}', space=vmem, size = 0x12000, scoped, tag = 'internal scratch']
  %s0 = inlined_call_operand.vmem [shape: f32[4,1,32], index: 0, kind: input, shape index: {}]
  %s1 = inlined_call_operand.vmem [shape: f32[4,128,32], index: 1, kind: input, shape index: {}]
  %s2 = inlined_call_operand.vmem [shape: f32[4,128,32], index: 2, kind: input, shape index: {}]
  %s3 = inlined_call_operand.vmem [shape: f32[4,1,128], index: 3, kind: input, shape index: {}]
  %s4 = inlined_call_operand.vmem [shape: f32[4,1,128], index: 4, kind: input, shape index: {}]
  %s5 = inlined_call_operand.vmem [shape: f32[32,32], index: 5, kind: input, shape index: {}]
  %s6 = inlined_call_operand.vmem [shape: f32[32,32], index: 6, kind: input, shape index: {}]
  %s7 = inlined_call_operand.vmem [shape: f32[1,32], index: 7, kind: input, shape index: {}]
  %s8 = inlined_call_operand.vmem [shape: f32[1,32], index: 8, kind: input, shape index: {}]
  %s9 = inlined_call_operand.vmem [shape: f32[1,32], index: 9, kind: input, shape index: {}]
  %s10 = inlined_call_operand.vmem [shape: f32[32,32], index: 10, kind: input, shape index: {}]
  %s11 = inlined_call_operand.vmem [shape: f32[1,32], index: 11, kind: input, shape index: {}]
  %s12 = inlined_call_operand.hbm [shape: f32[4,1,32], index: 12, kind: output, shape index: {0}]
  %s13 = inlined_call_operand.vmem [shape: f32[4,1,128], index: 13, kind: output, shape index: {1}]
  %s14 = inlined_call_operand.vmem [shape: f32[4,1,128], index: 14, kind: output, shape index: {2}]
  %15 = xla_tuple %s12, %s13, %s14
  %s16 = sld [smem:[#allocation0]]
  $region74: #{sentence_attention_steps.1} parent=0
    _
  %s18 = ssub.s32 1, %s16
  %s19 = scalar_select 0, %s18, %s16
  $region1: #{sentence_attention_steps.1} parent=0
    #allocation2 [shape = 'u8[2048]{0}', space=vmem, size = 0x800, scoped, tag = 'output window, operand 0, single buffered']
    #allocation3 [shape = 's32[1]{0}', space=sflag, size = 0x4, scoped, tag = 'scoped memory for sentence_attention_steps.1']
    %20 = vsyncpa [#allocation3], 0
    // Predicated region
    $region2: #{sentence_attention_steps.1} parent=1 // pred_check
      _
    $region3: #{sentence_attention_steps.1} parent=1 // pred_check_branch
      %22 = sbr.rel (0) target = $region5
    $region4: #{sentence_attention_steps.1} parent=1 // pred_region
      _
    $region5: #{sentence_attention_steps.1} parent=1 // pred_fallthru
      _
    // Predicated region
    $region6: #{sentence_attention_steps.1} parent=1 // pred_check
      _
    $region7: #{sentence_attention_steps.1} parent=1 // pred_check_branch
      %24 = sbr.rel (0) target = $region9
    $region8: #{sentence_attention_steps.1} parent=1 // pred_region
      _
    $region9: #{sentence_attention_steps.1} parent=1 // pred_fallthru
      _
    // Predicated region
    $region10: #{sentence_attention_steps.1} parent=1 // pred_check
      _
    $region11: #{sentence_attention_steps.1} parent=1 // pred_check_branch
      %26 = sbr.rel (0) target = $region13
    $region12: #{sentence_attention_steps.1} parent=1 // pred_region
      _
    $region13: #{sentence_attention_steps.1} parent=1 // pred_fallthru
      _
    // Predicated region
    $region14: #{sentence_attention_steps.1} parent=1 // pred_check
      _
    $region15: #{sentence_attention_steps.1} parent=1 // pred_check_branch
      %28 = sbr.rel (0) target = $region17
    $region16: #{sentence_attention_steps.1} parent=1 // pred_region
      _
    $region17: #{sentence_attention_steps.1} parent=1 // pred_fallthru
      _
    // Predicated region
    $region18: #{sentence_attention_steps.1} parent=1 // pred_check
      _
    $region19: #{sentence_attention_steps.1} parent=1 // pred_check_branch
      %30 = sbr.rel (0) target = $region21
    $region20: #{sentence_attention_steps.1} parent=1 // pred_region
      _
    $region21: #{sentence_attention_steps.1} parent=1 // pred_fallthru
      _
    // Predicated region
    $region22: #{sentence_attention_steps.1} parent=1 // pred_check
      _
    $region23: #{sentence_attention_steps.1} parent=1 // pred_check_branch
      %32 = sbr.rel (0) target = $region25
    $region24: #{sentence_attention_steps.1} parent=1 // pred_region
      _
    $region25: #{sentence_attention_steps.1} parent=1 // pred_fallthru
      _
    // Predicated region
    $region26: #{sentence_attention_steps.1} parent=1 // pred_check
      _
    $region27: #{sentence_attention_steps.1} parent=1 // pred_check_branch
      %34 = sbr.rel (0) target = $region29
    $region28: #{sentence_attention_steps.1} parent=1 // pred_region
      _
    $region29: #{sentence_attention_steps.1} parent=1 // pred_fallthru
      _
    // Predicated region
    $region30: #{sentence_attention_steps.1} parent=1 // pred_check
      _
    $region31: #{sentence_attention_steps.1} parent=1 // pred_check_branch
      %36 = sbr.rel (0) target = $region33
    $region32: #{sentence_attention_steps.1} parent=1 // pred_region
      _
    $region33: #{sentence_attention_steps.1} parent=1 // pred_fallthru
      _
    // Predicated region
    $region34: #{sentence_attention_steps.1} parent=1 // pred_check
      _
    $region35: #{sentence_attention_steps.1} parent=1 // pred_check_branch
      %38 = sbr.rel (0) target = $region37
    $region36: #{sentence_attention_steps.1} parent=1 // pred_region
      _
    $region37: #{sentence_attention_steps.1} parent=1 // pred_fallthru
      _
    // Predicated region
    $region38: #{sentence_attention_steps.1} parent=1 // pred_check
      _
    $region39: #{sentence_attention_steps.1} parent=1 // pred_check_branch
      %40 = sbr.rel (0) target = $region41
    $region40: #{sentence_attention_steps.1} parent=1 // pred_region
      _
    $region41: #{sentence_attention_steps.1} parent=1 // pred_fallthru
      _
    // Predicated region
    $region42: #{sentence_attention_steps.1} parent=1 // pred_check
      _
    $region43: #{sentence_attention_steps.1} parent=1 // pred_check_branch
      %42 = sbr.rel (0) target = $region45
    $region44: #{sentence_attention_steps.1} parent=1 // pred_region
      _
    $region45: #{sentence_attention_steps.1} parent=1 // pred_fallthru
      _
    // Predicated region
    $region46: #{sentence_attention_steps.1} parent=1 // pred_check
      _
    $region47: #{sentence_attention_steps.1} parent=1 // pred_check_branch
      %44 = sbr.rel (0) target = $region49
    $region48: #{sentence_attention_steps.1} parent=1 // pred_region
      _
    $region49: #{sentence_attention_steps.1} parent=1 // pred_fallthru
      _
    %v45 = vld [vmem:[%s0] sm:$0x1]
    %v46 = vld [vmem:[%s0 + $0x1] sm:$0x1]
    %v47 = vld [vmem:[%s0 + $0x2] sm:$0x1]
    %v48 = vld [vmem:[%s0 + $0x3] sm:$0x1]
    %v49 = vld [vmem:[%s5] sm:$0xff]
    %v50 = vld [vmem:[%s5 + $0x8] sm:$0xff]
    %v51 = vld [vmem:[%s5 + $0x10] sm:$0xff]
    %v52 = vld [vmem:[%s5 + $0x18] sm:$0xff]
    %v57 = vcombine.low %v45, %v46
    %v58 = vcombine.low %v47, %v48
    %v60 = vunpack.c.l.s4 1966171168
    %v61 = vunpack.c.0.s8 %v60
    %v62 = vlaneseq
    %v63 = vshrl.u32 %v62, 7
    %v64 = vsub.s32 %v61, %v63
    %v65 = vrot.slane %v57, %v64
    %v67 = vunpack.c.l.s4 1966171168
    %v68 = vunpack.c.0.s8 %v67
    %v69 = vlaneseq
    %v70 = vshrl.u32 %v69, 7
    %v71 = vsub.s32 %v68, %v70
    %v72 = vrot.slane %v58, %v71
    %v73 = vcombine.low %v65, %v72
    %v75 = vunpack.c.l.s4 1966171168
    %v76 = vunpack.c.0.s8 %v75
    %v77 = vlaneseq
    %v78 = vshrl.u32 %v77, 7
    %v79 = vsub.s32 %v76, %v78
    %v80 = vrot.slane %v73, %v79
    %vm81 = vcmask 261120
    %v82 = vsel %vm81, %v80, 0
    %84 = vmatprep.subr.mxu0 0.0
    %85 = vmatpush1.msra.mxu0 0.0
    %86 = vmatprep.subr.mxu0 0.0
    %87 = vmatpush1.msra.mxu0 0.0
    %88 = vmatprep.subr.mxu0 0.0
    %89 = vmatpush1.msra.mxu0 0.0
    %90 = vmatprep.subr.mxu0 0.0
    %91 = vmatpush1.msra.mxu0 0.0
    %92 = vmatprep.subr.mxu0 0.0
    %93 = vmatpush1.msra.mxu0 0.0
    %94 = vmatprep.subr.mxu0 0.0
    %95 = vmatpush1.msra.mxu0 0.0
    %96 = vmatprep.subr.mxu0 0.0
    %97 = vmatpush1.msra.mxu0 0.0
    %98 = vmatprep.subr.mxu0 0.0
    %99 = vmatpush1.msra.mxu0 0.0
    %100 = vmatprep.subr.mxu0 0.0
    %101 = vmatpush1.msra.mxu0 0.0
    %102 = vmatprep.subr.mxu0 0.0
    %103 = vmatpush1.msra.mxu0 0.0
    %104 = vmatprep.subr.mxu0 0.0
    %105 = vmatpush1.msra.mxu0 0.0
    %106 = vmatprep.subr.mxu0 0.0
    %107 = vmatpush1.msra.mxu0 0.0
    %108 = vmatprep.subr.mxu0 0.0
    %109 = vmatpush1.msra.mxu0 %v52
    %110 = vmatprep.subr.mxu0 0.0
    %111 = vmatpush1.msra.mxu0 %v51
    %112 = vmatprep.subr.mxu0 0.0
    %113 = vmatpush1.msra.mxu0 %v50
    %114 = vmatprep.subr.mxu0 0.0
    %115 = vmatpush1.msra.mxu0 %v49
    %116 = vmatprep.subr.mxu0 0.0
    %117 = vmatpush2.msra.mxu0 0.0
    %118 = vmatprep.subr.mxu0 0.0
    %119 = vmatpush2.msra.mxu0 0.0
    %120 = vmatprep.subr.mxu0 0.0
    %121 = vmatpush2.msra.mxu0 0.0
    %122 = vmatprep.subr.mxu0 0.0
    %123 = vmatpush2.msra.mxu0 0.0
    %124 = vmatprep.subr.mxu0 0.0
    %125 = vmatpush2.msra.mxu0 0.0
    %126 = vmatprep.subr.mxu0 0.0
    %127 = vmatpush2.msra.mxu0 0.0
    %128 = vmatprep.subr.mxu0 0.0
    %129 = vmatpush2.msra.mxu0 0.0
    %130 = vmatprep.subr.mxu0 0.0
    %131 = vmatpush2.msra.mxu0 0.0
    %132 = vmatprep.subr.mxu0 0.0
    %133 = vmatpush2.msra.mxu0 0.0
    %134 = vmatprep.subr.mxu0 0.0
    %135 = vmatpush2.msra.mxu0 0.0
    %136 = vmatprep.subr.mxu0 0.0
    %137 = vmatpush2.msra.mxu0 0.0
    %138 = vmatprep.subr.mxu0 0.0
    %139 = vmatpush2.msra.mxu0 0.0
    %140 = vmatprep.subr.mxu0 0.0
    %141 = vmatpush2.msra.mxu0 0.0
    %142 = vmatprep.subr.mxu0 0.0
    %143 = vmatpush2.msra.mxu0 0.0
    %144 = vmatprep.subr.mxu0 0.0
    %145 = vmatpush2.msra.mxu0 0.0
    %146 = vmatprep.subr.mxu0 0.0
    %147 = vmatpush2.msra.mxu0 0.0
    %148 = vmatprep.mubr.f32.mxu0 0.0
    %149 = vmatmul.mubr.f32.gmra.mxu0 %v82
    %v150 = vpop.f32.mrf.mxu0
    %v151 = vadd.f32 0.0, %v150
    %v152 = vpop.f32.mrf.mxu0
    %153 = vdwg.mxu0
    %v154 = vld [vmem:[%s6] sm:$0xff]
    %v155 = vld [vmem:[%s6 + $0x8] sm:$0xff]
    %v156 = vld [vmem:[%s6 + $0x10] sm:$0xff]
    %v157 = vld [vmem:[%s6 + $0x18] sm:$0xff]
    %158 = vmatprep.subr.mxu0 0.0
    %159 = vmatpush1.msra.mxu0 0.0
    %160 = vmatprep.subr.mxu0 0.0
    %161 = vmatpush1.msra.mxu0 0.0
    %162 = vmatprep.subr.mxu0 0.0
    %163 = vmatpush1.msra.mxu0 0.0
    %164 = vmatprep.subr.mxu0 0.0
    %165 = vmatpush1.msra.mxu0 0.0
    %166 = vmatprep.subr.mxu0 0.0
    %167 = vmatpush1.msra.mxu0 0.0
    %168 = vmatprep.subr.mxu0 0.0
    %169 = vmatpush1.msra.mxu0 0.0
    %170 = vmatprep.subr.mxu0 0.0
    %171 = vmatpush1.msra.mxu0 0.0
    %172 = vmatprep.subr.mxu0 0.0
    %173 = vmatpush1.msra.mxu0 0.0
    %174 = vmatprep.subr.mxu0 0.0
    %175 = vmatpush1.msra.mxu0 0.0
    %176 = vmatprep.subr.mxu0 0.0
    %177 = vmatpush1.msra.mxu0 0.0
    %178 = vmatprep.subr.mxu0 0.0
    %179 = vmatpush1.msra.mxu0 0.0
    %180 = vmatprep.subr.mxu0 0.0
    %181 = vmatpush1.msra.mxu0 0.0
    %182 = vmatprep.subr.mxu0 0.0
    %183 = vmatpush1.msra.mxu0 %v157
    %184 = vmatprep.subr.mxu0 0.0
    %185 = vmatpush1.msra.mxu0 %v156
    %186 = vmatprep.subr.mxu0 0.0
    %187 = vmatpush1.msra.mxu0 %v155
    %188 = vmatprep.subr.mxu0 0.0
    %189 = vmatpush1.msra.mxu0 %v154
    %190 = vmatprep.subr.mxu0 0.0
    %191 = vmatpush2.msra.mxu0 0.0
    %192 = vmatprep.subr.mxu0 0.0
    %193 = vmatpush2.msra.mxu0 0.0
    %194 = vmatprep.subr.mxu0 0.0
    %195 = vmatpush2.msra.mxu0 0.0
    %196 = vmatprep.subr.mxu0 0.0
    %197 = vmatpush2.msra.mxu0 0.0
    %198 = vmatprep.subr.mxu0 0.0
    %199 = vmatpush2.msra.mxu0 0.0
    %200 = vmatprep.subr.mxu0 0.0
    %201 = vmatpush2.msra.mxu0 0.0
    %202 = vmatprep.subr.mxu0 0.0
    %203 = vmatpush2.msra.mxu0 0.0
    %204 = vmatprep.subr.mxu0 0.0
    %205 = vmatpush2.msra.mxu0 0.0
    %206 = vmatprep.subr.mxu0 0.0
    %207 = vmatpush2.msra.mxu0 0.0
    %208 = vmatprep.subr.mxu0 0.0
    %209 = vmatpush2.msra.mxu0 0.0
    %210 = vmatprep.subr.mxu0 0.0
    %211 = vmatpush2.msra.mxu0 0.0
    %212 = vmatprep.subr.mxu0 0.0
    %213 = vmatpush2.msra.mxu0 0.0
    %214 = vmatprep.subr.mxu0 0.0
    %215 = vmatpush2.msra.mxu0 0.0
    %216 = vmatprep.subr.mxu0 0.0
    %217 = vmatpush2.msra.mxu0 0.0
    %218 = vmatprep.subr.mxu0 0.0
    %219 = vmatpush2.msra.mxu0 0.0
    %220 = vmatprep.subr.mxu0 0.0
    %221 = vmatpush2.msra.mxu0 0.0
    %222 = vmatprep.mubr.f32.mxu0 0.0
    %223 = vmatmul.mubr.f32.gmra.mxu0 %v82
    %v224 = vpop.f32.mrf.mxu0
    %v225 = vadd.f32 0.0, %v224
    %v226 = vpop.f32.mrf.mxu0
    %227 = vdwg.mxu0
    %v228 = vld [vmem:[%s3] sm:$0x1]
    %v229 = vld [vmem:[%s3 + $0x1] sm:$0x1]
    %v230 = vld [vmem:[%s3 + $0x2] sm:$0x1]
    %v231 = vld [vmem:[%s3 + $0x3] sm:$0x1]
    %v232 = vld [vmem:[%s4] sm:$0x1]
    %v233 = vld [vmem:[%s4 + $0x1] sm:$0x1]
    %v234 = vld [vmem:[%s4 + $0x2] sm:$0x1]
    %v235 = vld [vmem:[%s4 + $0x3] sm:$0x1]
    %v236 = vld [vmem:[%s2] sm:$0xff]
    %v237 = vld [vmem:[%s2 + $0x8] sm:$0xff]
    %v238 = vld [vmem:[%s2 + $0x10] sm:$0xff]
    %v239 = vld [vmem:[%s2 + $0x18] sm:$0xff]
    %v240 = vld [vmem:[%s2 + $0x20] sm:$0xff]
    %v241 = vld [vmem:[%s2 + $0x28] sm:$0xff]
    %v242 = vld [vmem:[%s2 + $0x30] sm:$0xff]
    %v243 = vld [vmem:[%s2 + $0x38] sm:$0xff]
    %v244 = vld [vmem:[%s2 + $0x40] sm:$0xff]
    %v245 = vld [vmem:[%s2 + $0x48] sm:$0xff]
    %v246 = vld [vmem:[%s2 + $0x50] sm:$0xff]
    %v247 = vld [vmem:[%s2 + $0x58] sm:$0xff]
    %v248 = vld [vmem:[%s2 + $0x60] sm:$0xff]
    %v249 = vld [vmem:[%s2 + $0x68] sm:$0xff]
    %v250 = vld [vmem:[%s2 + $0x70] sm:$0xff]
    %v251 = vld [vmem:[%s2 + $0x78] sm:$0xff]
    %v252 = vld [vmem:[%s2 + $0x80] sm:$0xff]
    %v253 = vld [vmem:[%s2 + $0x88] sm:$0xff]
    %v254 = vld [vmem:[%s2 + $0x90] sm:$0xff]
    %v255 = vld [vmem:[%s2 + $0x98] sm:$0xff]
    %v256 = vld [vmem:[%s2 + $0xa0] sm:$0xff]
    %v257 = vld [vmem:[%s2 + $0xa8] sm:$0xff]
    %v258 = vld [vmem:[%s2 + $0xb0] sm:$0xff]
    %v259 = vld [vmem:[%s2 + $0xb8] sm:$0xff]
    %v260 = vld [vmem:[%s2 + $0xc0] sm:$0xff]
    %v261 = vld [vmem:[%s2 + $0xc8] sm:$0xff]
    %v262 = vld [vmem:[%s2 + $0xd0] sm:$0xff]
    %v263 = vld [vmem:[%s2 + $0xd8] sm:$0xff]
    %v264 = vld [vmem:[%s2 + $0xe0] sm:$0xff]
    %v265 = vld [vmem:[%s2 + $0xe8] sm:$0xff]
    %v266 = vld [vmem:[%s2 + $0xf0] sm:$0xff]
    %v267 = vld [vmem:[%s2 + $0xf8] sm:$0xff]
    %v268 = vld [vmem:[%s2 + $0x100] sm:$0xff]
    %v269 = vld [vmem:[%s2 + $0x108] sm:$0xff]
    %v270 = vld [vmem:[%s2 + $0x110] sm:$0xff]
    %v271 = vld [vmem:[%s2 + $0x118] sm:$0xff]
    %v272 = vld [vmem:[%s2 + $0x120] sm:$0xff]
    %v273 = vld [vmem:[%s2 + $0x128] sm:$0xff]
    %v274 = vld [vmem:[%s2 + $0x130] sm:$0xff]
    %v275 = vld [vmem:[%s2 + $0x138] sm:$0xff]
    %v276 = vld [vmem:[%s2 + $0x140] sm:$0xff]
    %v277 = vld [vmem:[%s2 + $0x148] sm:$0xff]
    %v278 = vld [vmem:[%s2 + $0x150] sm:$0xff]
    %v279 = vld [vmem:[%s2 + $0x158] sm:$0xff]
    %v280 = vld [vmem:[%s2 + $0x160] sm:$0xff]
    %v281 = vld [vmem:[%s2 + $0x168] sm:$0xff]
    %v282 = vld [vmem:[%s2 + $0x170] sm:$0xff]
    %v283 = vld [vmem:[%s2 + $0x178] sm:$0xff]
    %v284 = vld [vmem:[%s2 + $0x180] sm:$0xff]
    %v285 = vld [vmem:[%s2 + $0x188] sm:$0xff]
    %v286 = vld [vmem:[%s2 + $0x190] sm:$0xff]
    %v287 = vld [vmem:[%s2 + $0x198] sm:$0xff]
    %v288 = vld [vmem:[%s2 + $0x1a0] sm:$0xff]
    %v289 = vld [vmem:[%s2 + $0x1a8] sm:$0xff]
    %v290 = vld [vmem:[%s2 + $0x1b0] sm:$0xff]
    %v291 = vld [vmem:[%s2 + $0x1b8] sm:$0xff]
    %v292 = vld [vmem:[%s2 + $0x1c0] sm:$0xff]
    %v293 = vld [vmem:[%s2 + $0x1c8] sm:$0xff]
    %v294 = vld [vmem:[%s2 + $0x1d0] sm:$0xff]
    %v295 = vld [vmem:[%s2 + $0x1d8] sm:$0xff]
    %v296 = vld [vmem:[%s2 + $0x1e0] sm:$0xff]
    %v297 = vld [vmem:[%s2 + $0x1e8] sm:$0xff]
    %v298 = vld [vmem:[%s2 + $0x1f0] sm:$0xff]
    %v299 = vld [vmem:[%s2 + $0x1f8] sm:$0xff]
    %v302 = vunpack.c.l.s4 1966171168
    %v303 = vunpack.c.0.s8 %v302
    %v304 = vlaneseq
    %v305 = vshrl.u32 %v304, 7
    %v306 = vsub.s32 %v303, %v305
    %v307 = vrot.slane %v151, %v306
    %v308 = vcombine.high %v307, %v307
    %v310 = vunpack.c.l.s4 1966171168
    %v311 = vunpack.c.0.s8 %v310
    %v312 = vlaneseq
    %v313 = vshrl.u32 %v312, 7
    %v314 = vsub.s32 %v311, %v313
    %v315 = vrot.slane %v307, %v314
    %v317 = vunpack.c.l.s4 1966171168
    %v318 = vunpack.c.0.s8 %v317
    %v319 = vlaneseq
    %v320 = vshrl.u32 %v319, 7
    %v321 = vsub.s32 %v318, %v320
    %v322 = vrot.slane %v308, %v321
    %v323 = vcombine.high %v315, %v315
    %v324 = vcombine.high %v322, %v322
    %v325 = vlaneseq
    %v326 = vshrl.u32 %v325, 7
    %v327 = vsub.s32 0, %v326
    %v328 = vrot.slane %v315, %v327
    %v329 = vlaneseq
    %v330 = vshrl.u32 %v329, 7
    %v331 = vsub.s32 0, %v330
    %v332 = vrot.slane %v322, %v331
    %v333 = vlaneseq
    %v334 = vshrl.u32 %v333, 7
    %v335 = vsub.s32 0, %v334
    %v336 = vrot.slane %v323, %v335
    %v337 = vlaneseq
    %v338 = vshrl.u32 %v337, 7
    %v339 = vsub.s32 0, %v338
    %v340 = vrot.slane %v324, %v339
    %v345 = vadd.f32 %v236, %v328
    %v346 = vadd.f32 %v237, %v328
    %v347 = vadd.f32 %v238, %v328
    %v348 = vadd.f32 %v239, %v328
    %v349 = vadd.f32 %v240, %v328
    %v350 = vadd.f32 %v241, %v328
    %v351 = vadd.f32 %v242, %v328
    %v352 = vadd.f32 %v243, %v328
    %v353 = vadd.f32 %v244, %v328
    %v354 = vadd.f32 %v245, %v328
    %v355 = vadd.f32 %v246, %v328
    %v356 = vadd.f32 %v247, %v328
    %v357 = vadd.f32 %v248, %v328
    %v358 = vadd.f32 %v249, %v328
    %v359 = vadd.f32 %v250, %v328
    %v360 = vadd.f32 %v251, %v328
    %v361 = vadd.f32 %v252, %v332
    %v362 = vadd.f32 %v253, %v332
    %v363 = vadd.f32 %v254, %v332
    %v364 = vadd.f32 %v255, %v332
    %v365 = vadd.f32 %v256, %v332
    %v366 = vadd.f32 %v257, %v332
    %v367 = vadd.f32 %v258, %v332
    %v368 = vadd.f32 %v259, %v332
    %v369 = vadd.f32 %v260, %v332
    %v370 = vadd.f32 %v261, %v332
    %v371 = vadd.f32 %v262, %v332
    %v372 = vadd.f32 %v263, %v332
    %v373 = vadd.f32 %v264, %v332
    %v374 = vadd.f32 %v265, %v332
    %v375 = vadd.f32 %v266, %v332
    %v376 = vadd.f32 %v267, %v332
    %v377 = vadd.f32 %v268, %v336
    %v378 = vadd.f32 %v269, %v336
    %v379 = vadd.f32 %v270, %v336
    %v380 = vadd.f32 %v271, %v336
    %v381 = vadd.f32 %v272, %v336
    %v382 = vadd.f32 %v273, %v336
    %v383 = vadd.f32 %v274, %v336
    %v384 = vadd.f32 %v275, %v336
    %v385 = vadd.f32 %v276, %v336
    %v386 = vadd.f32 %v277, %v336
    %v387 = vadd.f32 %v278, %v336
    %v388 = vadd.f32 %v279, %v336
    %v389 = vadd.f32 %v280, %v336
    %v390 = vadd.f32 %v281, %v336
    %v391 = vadd.f32 %v282, %v336
    %v392 = vadd.f32 %v283, %v336
    %v393 = vadd.f32 %v284, %v340
    %v394 = vadd.f32 %v285, %v340
    %v395 = vadd.f32 %v286, %v340
    %v396 = vadd.f32 %v287, %v340
    %v397 = vadd.f32 %v288, %v340
    %v398 = vadd.f32 %v289, %v340
    %v399 = vadd.f32 %v290, %v340
    %v400 = vadd.f32 %v291, %v340
    %v401 = vadd.f32 %v292, %v340
    %v402 = vadd.f32 %v293, %v340
    %v403 = vadd.f32 %v294, %v340
    %v404 = vadd.f32 %v295, %v340
    %v405 = vadd.f32 %v296, %v340
    %v406 = vadd.f32 %v297, %v340
    %v407 = vadd.f32 %v298, %v340
    %v408 = vadd.f32 %v299, %v340
    %v409 = vlaneseq
    %v410 = vshrl.u32 %v409, 7
    %v411 = vsub.s32 0, %v410
    %v412 = vrot.slane %v228, %v411
    %414 = vbcast.lane.b32.xlu0 %v412, 256
    %v415 = vpop.permute.xlu0 %414
    %s417 = sor.u32 256, 8
    %418 = vbcast.lane.b32.xlu0 %v412, %s417
    %v419 = vpop.permute.xlu0 %418
    %s421 = sor.u32 256, 16
    %422 = vbcast.lane.b32.xlu0 %v412, %s421
    %v423 = vpop.permute.xlu0 %422
    %s425 = sor.u32 256, 24
    %426 = vbcast.lane.b32.xlu0 %v412, %s425
    %v427 = vpop.permute.xlu0 %426
    %s429 = sor.u32 256, 32
    %430 = vbcast.lane.b32.xlu0 %v412, %s429
    %v431 = vpop.permute.xlu0 %430
    %s433 = sor.u32 256, 40
    %434 = vbcast.lane.b32.xlu0 %v412, %s433
    %v435 = vpop.permute.xlu0 %434
    %s437 = sor.u32 256, 48
    %438 = vbcast.lane.b32.xlu0 %v412, %s437
    %v439 = vpop.permute.xlu0 %438
    %s441 = sor.u32 256, 56
    %442 = vbcast.lane.b32.xlu0 %v412, %s441
    %v443 = vpop.permute.xlu0 %442
    %s445 = sor.u32 256, 64
    %446 = vbcast.lane.b32.xlu0 %v412, %s445
    %v447 = vpop.permute.xlu0 %446
    %s449 = sor.u32 256, 72
    %450 = vbcast.lane.b32.xlu0 %v412, %s449
    %v451 = vpop.permute.xlu0 %450
    %s453 = sor.u32 256, 80
    %454 = vbcast.lane.b32.xlu0 %v412, %s453
    %v455 = vpop.permute.xlu0 %454
    %s457 = sor.u32 256, 88
    %458 = vbcast.lane.b32.xlu0 %v412, %s457
    %v459 = vpop.permute.xlu0 %458
    %s461 = sor.u32 256, 96
    %462 = vbcast.lane.b32.xlu0 %v412, %s461
    %v463 = vpop.permute.xlu0 %462
    %s465 = sor.u32 256, 104
    %466 = vbcast.lane.b32.xlu0 %v412, %s465
    %v467 = vpop.permute.xlu0 %466
    %s469 = sor.u32 256, 112
    %470 = vbcast.lane.b32.xlu0 %v412, %s469
    %v471 = vpop.permute.xlu0 %470
    %s473 = sor.u32 256, 120
    %474 = vbcast.lane.b32.xlu0 %v412, %s473
    %v475 = vpop.permute.xlu0 %474
    %v476 = vlaneseq
    %v477 = vshrl.u32 %v476, 7
    %v478 = vsub.s32 0, %v477
    %v479 = vrot.slane %v229, %v478
    %481 = vbcast.lane.b32.xlu0 %v479, 256
    %v482 = vpop.permute.xlu0 %481
    %s484 = sor.u32 256, 8
    %485 = vbcast.lane.b32.xlu0 %v479, %s484
    %v486 = vpop.permute.xlu0 %485
    %s488 = sor.u32 256, 16
    %489 = vbcast.lane.b32.xlu0 %v479, %s488
    %v490 = vpop.permute.xlu0 %489
    %s492 = sor.u32 256, 24
    %493 = vbcast.lane.b32.xlu0 %v479, %s492
    %v494 = vpop.permute.xlu0 %493
    %s496 = sor.u32 256, 32
    %497 = vbcast.lane.b32.xlu0 %v479, %s496
    %v498 = vpop.permute.xlu0 %497
    %s500 = sor.u32 256, 40
    %501 = vbcast.lane.b32.xlu0 %v479, %s500
    %v502 = vpop.permute.xlu0 %501
    %s504 = sor.u32 256, 48
    %505 = vbcast.lane.b32.xlu0 %v479, %s504
    %v506 = vpop.permute.xlu0 %505
    %s508 = sor.u32 256, 56
    %509 = vbcast.lane.b32.xlu0 %v479, %s508
    %v510 = vpop.permute.xlu0 %509
    %s512 = sor.u32 256, 64
    %513 = vbcast.lane.b32.xlu0 %v479, %s512
    %v514 = vpop.permute.xlu0 %513
    %s516 = sor.u32 256, 72
    %517 = vbcast.lane.b32.xlu0 %v479, %s516
    %v518 = vpop.permute.xlu0 %517
    %s520 = sor.u32 256, 80
    %521 = vbcast.lane.b32.xlu0 %v479, %s520
    %v522 = vpop.permute.xlu0 %521
    %s524 = sor.u32 256, 88
    %525 = vbcast.lane.b32.xlu0 %v479, %s524
    %v526 = vpop.permute.xlu0 %525
    %s528 = sor.u32 256, 96
    %529 = vbcast.lane.b32.xlu0 %v479, %s528
    %v530 = vpop.permute.xlu0 %529
    %s532 = sor.u32 256, 104
    %533 = vbcast.lane.b32.xlu0 %v479, %s532
    %v534 = vpop.permute.xlu0 %533
    %s536 = sor.u32 256, 112
    %537 = vbcast.lane.b32.xlu0 %v479, %s536
    %v538 = vpop.permute.xlu0 %537
    %s540 = sor.u32 256, 120
    %541 = vbcast.lane.b32.xlu0 %v479, %s540
    %v542 = vpop.permute.xlu0 %541
    %v543 = vlaneseq
    %v544 = vshrl.u32 %v543, 7
    %v545 = vsub.s32 0, %v544
    %v546 = vrot.slane %v230, %v545
    %548 = vbcast.lane.b32.xlu0 %v546, 256
    %v549 = vpop.permute.xlu0 %548
    %s551 = sor.u32 256, 8
    %552 = vbcast.lane.b32.xlu0 %v546, %s551
    %v553 = vpop.permute.xlu0 %552
    %s555 = sor.u32 256, 16
    %556 = vbcast.lane.b32.xlu0 %v546, %s555
    %v557 = vpop.permute.xlu0 %556
    %s559 = sor.u32 256, 24
    %560 = vbcast.lane.b32.xlu0 %v546, %s559
    %v561 = vpop.permute.xlu0 %560
    %s563 = sor.u32 256, 32
    %564 = vbcast.lane.b32.xlu0 %v546, %s563
    %v565 = vpop.permute.xlu0 %564
    %s567 = sor.u32 256, 40
    %568 = vbcast.lane.b32.xlu0 %v546, %s567
    %v569 = vpop.permute.xlu0 %568
    %s571 = sor.u32 256, 48
    %572 = vbcast.lane.b32.xlu0 %v546, %s571
    %v573 = vpop.permute.xlu0 %572
    %s575 = sor.u32 256, 56
    %576 = vbcast.lane.b32.xlu0 %v546, %s575
    %v577 = vpop.permute.xlu0 %576
    %s579 = sor.u32 256, 64
    %580 = vbcast.lane.b32.xlu0 %v546, %s579
    %v581 = vpop.permute.xlu0 %580
    %s583 = sor.u32 256, 72
    %584 = vbcast.lane.b32.xlu0 %v546, %s583
    %v585 = vpop.permute.xlu0 %584
    %s587 = sor.u32 256, 80
    %588 = vbcast.lane.b32.xlu0 %v546, %s587
    %v589 = vpop.permute.xlu0 %588
    %s591 = sor.u32 256, 88
    %592 = vbcast.lane.b32.xlu0 %v546, %s591
    %v593 = vpop.permute.xlu0 %592
    %s595 = sor.u32 256, 96
    %596 = vbcast.lane.b32.xlu0 %v546, %s595
    %v597 = vpop.permute.xlu0 %596
    %s599 = sor.u32 256, 104
    %600 = vbcast.lane.b32.xlu0 %v546, %s599
    %v601 = vpop.permute.xlu0 %600
    %s603 = sor.u32 256, 112
    %604 = vbcast.lane.b32.xlu0 %v546, %s603
    %v605 = vpop.permute.xlu0 %604
    %s607 = sor.u32 256, 120
    %608 = vbcast.lane.b32.xlu0 %v546, %s607
    %v609 = vpop.permute.xlu0 %608
    %v610 = vlaneseq
    %v611 = vshrl.u32 %v610, 7
    %v612 = vsub.s32 0, %v611
    %v613 = vrot.slane %v231, %v612
    %615 = vbcast.lane.b32.xlu0 %v613, 256
    %v616 = vpop.permute.xlu0 %615
    %s618 = sor.u32 256, 8
    %619 = vbcast.lane.b32.xlu0 %v613, %s618
    %v620 = vpop.permute.xlu0 %619
    %s622 = sor.u32 256, 16
    %623 = vbcast.lane.b32.xlu0 %v613, %s622
    %v624 = vpop.permute.xlu0 %623
    %s626 = sor.u32 256, 24
    %627 = vbcast.lane.b32.xlu0 %v613, %s626
    %v628 = vpop.permute.xlu0 %627
    %s630 = sor.u32 256, 32
    %631 = vbcast.lane.b32.xlu0 %v613, %s630
    %v632 = vpop.permute.xlu0 %631
    %s634 = sor.u32 256, 40
    %635 = vbcast.lane.b32.xlu0 %v613, %s634
    %v636 = vpop.permute.xlu0 %635
    %s638 = sor.u32 256, 48
    %639 = vbcast.lane.b32.xlu0 %v613, %s638
    %v640 = vpop.permute.xlu0 %639
    %s642 = sor.u32 256, 56
    %643 = vbcast.lane.b32.xlu0 %v613, %s642
    %v644 = vpop.permute.xlu0 %643
    %s646 = sor.u32 256, 64
    %647 = vbcast.lane.b32.xlu0 %v613, %s646
    %v648 = vpop.permute.xlu0 %647
    %s650 = sor.u32 256, 72
    %651 = vbcast.lane.b32.xlu0 %v613, %s650
    %v652 = vpop.permute.xlu0 %651
    %s654 = sor.u32 256, 80
    %655 = vbcast.lane.b32.xlu0 %v613, %s654
    %v656 = vpop.permute.xlu0 %655
    %s658 = sor.u32 256, 88
    %659 = vbcast.lane.b32.xlu0 %v613, %s658
    %v660 = vpop.permute.xlu0 %659
    %s662 = sor.u32 256, 96
    %663 = vbcast.lane.b32.xlu0 %v613, %s662
    %v664 = vpop.permute.xlu0 %663
    %s666 = sor.u32 256, 104
    %667 = vbcast.lane.b32.xlu0 %v613, %s666
    %v668 = vpop.permute.xlu0 %667
    %s670 = sor.u32 256, 112
    %671 = vbcast.lane.b32.xlu0 %v613, %s670
    %v672 = vpop.permute.xlu0 %671
    %s674 = sor.u32 256, 120
    %675 = vbcast.lane.b32.xlu0 %v613, %s674
    %v676 = vpop.permute.xlu0 %675
    %v677 = vld [vmem:[%s8] sm:$0x1]
    %v679 = vlaneseq
    %v680 = vshrl.u32 %v679, 7
    %v681 = vsub.s32 0, %v680
    %v682 = vrot.slane %v677, %v681
    %v684 = vmul.f32 %v415, %v682
    %v685 = vmul.f32 %v419, %v682
    %v686 = vmul.f32 %v423, %v682
    %v687 = vmul.f32 %v427, %v682
    %v688 = vmul.f32 %v431, %v682
    %v689 = vmul.f32 %v435, %v682
    %v690 = vmul.f32 %v439, %v682
    %v691 = vmul.f32 %v443, %v682
    %v692 = vmul.f32 %v447, %v682
    %v693 = vmul.f32 %v451, %v682
    %v694 = vmul.f32 %v455, %v682
    %v695 = vmul.f32 %v459, %v682
    %v696 = vmul.f32 %v463, %v682
    %v697 = vmul.f32 %v467, %v682
    %v698 = vmul.f32 %v471, %v682
    %v699 = vmul.f32 %v475, %v682
    %v700 = vmul.f32 %v482, %v682
    %v701 = vmul.f32 %v486, %v682
    %v702 = vmul.f32 %v490, %v682
    %v703 = vmul.f32 %v494, %v682
    %v704 = vmul.f32 %v498, %v682
    %v705 = vmul.f32 %v502, %v682
    %v706 = vmul.f32 %v506, %v682
    %v707 = vmul.f32 %v510, %v682
    %v708 = vmul.f32 %v514, %v682
    %v709 = vmul.f32 %v518, %v682
    %v710 = vmul.f32 %v522, %v682
    %v711 = vmul.f32 %v526, %v682
    %v712 = vmul.f32 %v530, %v682
    %v713 = vmul.f32 %v534, %v682
    %v714 = vmul.f32 %v538, %v682
    %v715 = vmul.f32 %v542, %v682
    %v716 = vmul.f32 %v549, %v682
    %v717 = vmul.f32 %v553, %v682
    %v718 = vmul.f32 %v557, %v682
    %v719 = vmul.f32 %v561, %v682
    %v720 = vmul.f32 %v565, %v682
    %v721 = vmul.f32 %v569, %v682
    %v722 = vmul.f32 %v573, %v682
    %v723 = vmul.f32 %v577, %v682
    %v724 = vmul.f32 %v581, %v682
    %v725 = vmul.f32 %v585, %v682
    %v726 = vmul.f32 %v589, %v682
    %v727 = vmul.f32 %v593, %v682
    %v728 = vmul.f32 %v597, %v682
    %v729 = vmul.f32 %v601, %v682
    %v730 = vmul.f32 %v605, %v682
    %v731 = vmul.f32 %v609, %v682
    %v732 = vmul.f32 %v616, %v682
    %v733 = vmul.f32 %v620, %v682
    %v734 = vmul.f32 %v624, %v682
    %v735 = vmul.f32 %v628, %v682
    %v736 = vmul.f32 %v632, %v682
    %v737 = vmul.f32 %v636, %v682
    %v738 = vmul.f32 %v640, %v682
    %v739 = vmul.f32 %v644, %v682
    %v740 = vmul.f32 %v648, %v682
    %v741 = vmul.f32 %v652, %v682
    %v742 = vmul.f32 %v656, %v682
    %v743 = vmul.f32 %v660, %v682
    %v744 = vmul.f32 %v664, %v682
    %v745 = vmul.f32 %v668, %v682
    %v746 = vmul.f32 %v672, %v682
    %v747 = vmul.f32 %v676, %v682
    %v748 = vadd.f32 %v345, %v684
    %v749 = vadd.f32 %v346, %v685
    %v750 = vadd.f32 %v347, %v686
    %v751 = vadd.f32 %v348, %v687
    %v752 = vadd.f32 %v349, %v688
    %v753 = vadd.f32 %v350, %v689
    %v754 = vadd.f32 %v351, %v690
    %v755 = vadd.f32 %v352, %v691
    %v756 = vadd.f32 %v353, %v692
    %v757 = vadd.f32 %v354, %v693
    %v758 = vadd.f32 %v355, %v694
    %v759 = vadd.f32 %v356, %v695
    %v760 = vadd.f32 %v357, %v696
    %v761 = vadd.f32 %v358, %v697
    %v762 = vadd.f32 %v359, %v698
    %v763 = vadd.f32 %v360, %v699
    %v764 = vadd.f32 %v361, %v700
    %v765 = vadd.f32 %v362, %v701
    %v766 = vadd.f32 %v363, %v702
    %v767 = vadd.f32 %v364, %v703
    %v768 = vadd.f32 %v365, %v704
    %v769 = vadd.f32 %v366, %v705
    %v770 = vadd.f32 %v367, %v706
    %v771 = vadd.f32 %v368, %v707
    %v772 = vadd.f32 %v369, %v708
    %v773 = vadd.f32 %v370, %v709
    %v774 = vadd.f32 %v371, %v710
    %v775 = vadd.f32 %v372, %v711
    %v776 = vadd.f32 %v373, %v712
    %v777 = vadd.f32 %v374, %v713
    %v778 = vadd.f32 %v375, %v714
    %v779 = vadd.f32 %v376, %v715
    %v780 = vadd.f32 %v377, %v716
    %v781 = vadd.f32 %v378, %v717
    %v782 = vadd.f32 %v379, %v718
    %v783 = vadd.f32 %v380, %v719
    %v784 = vadd.f32 %v381, %v720
    %v785 = vadd.f32 %v382, %v721
    %v786 = vadd.f32 %v383, %v722
    %v787 = vadd.f32 %v384, %v723
    %v788 = vadd.f32 %v385, %v724
    %v789 = vadd.f32 %v386, %v725
    %v790 = vadd.f32 %v387, %v726
    %v791 = vadd.f32 %v388, %v727
    %v792 = vadd.f32 %v389, %v728
    %v793 = vadd.f32 %v390, %v729
    %v794 = vadd.f32 %v391, %v730
    %v795 = vadd.f32 %v392, %v731
    %v796 = vadd.f32 %v393, %v732
    %v797 = vadd.f32 %v394, %v733
    %v798 = vadd.f32 %v395, %v734
    %v799 = vadd.f32 %v396, %v735
    %v800 = vadd.f32 %v397, %v736
    %v801 = vadd.f32 %v398, %v737
    %v802 = vadd.f32 %v399, %v738
    %v803 = vadd.f32 %v400, %v739
    %v804 = vadd.f32 %v401, %v740
    %v805 = vadd.f32 %v402, %v741
    %v806 = vadd.f32 %v403, %v742
    %v807 = vadd.f32 %v404, %v743
    %v808 = vadd.f32 %v405, %v744
    %v809 = vadd.f32 %v406, %v745
    %v810 = vadd.f32 %v407, %v746
    %v811 = vadd.f32 %v408, %v747
    %v812 = vld [vmem:[%s9] sm:$0x1]
    %v814 = vlaneseq
    %v815 = vshrl.u32 %v814, 7
    %v816 = vsub.s32 0, %v815
    %v817 = vrot.slane %v812, %v816
    %v819 = vadd.f32 %v748, %v817
    %v820 = vadd.f32 %v749, %v817
    %v821 = vadd.f32 %v750, %v817
    %v822 = vadd.f32 %v751, %v817
    %v823 = vadd.f32 %v752, %v817
    %v824 = vadd.f32 %v753, %v817
    %v825 = vadd.f32 %v754, %v817
    %v826 = vadd.f32 %v755, %v817
    %v827 = vadd.f32 %v756, %v817
    %v828 = vadd.f32 %v757, %v817
    %v829 = vadd.f32 %v758, %v817
    %v830 = vadd.f32 %v759, %v817
    %v831 = vadd.f32 %v760, %v817
    %v832 = vadd.f32 %v761, %v817
    %v833 = vadd.f32 %v762, %v817
    %v834 = vadd.f32 %v763, %v817
    %v835 = vadd.f32 %v764, %v817
    %v836 = vadd.f32 %v765, %v817
    %v837 = vadd.f32 %v766, %v817
    %v838 = vadd.f32 %v767, %v817
    %v839 = vadd.f32 %v768, %v817
    %v840 = vadd.f32 %v769, %v817
    %v841 = vadd.f32 %v770, %v817
    %v842 = vadd.f32 %v771, %v817
    %v843 = vadd.f32 %v772, %v817
    %v844 = vadd.f32 %v773, %v817
    %v845 = vadd.f32 %v774, %v817
    %v846 = vadd.f32 %v775, %v817
    %v847 = vadd.f32 %v776, %v817
    %v848 = vadd.f32 %v777, %v817
    %v849 = vadd.f32 %v778, %v817
    %v850 = vadd.f32 %v779, %v817
    %v851 = vadd.f32 %v780, %v817
    %v852 = vadd.f32 %v781, %v817
    %v853 = vadd.f32 %v782, %v817
    %v854 = vadd.f32 %v783, %v817
    %v855 = vadd.f32 %v784, %v817
    %v856 = vadd.f32 %v785, %v817
    %v857 = vadd.f32 %v786, %v817
    %v858 = vadd.f32 %v787, %v817
    %v859 = vadd.f32 %v788, %v817
    %v860 = vadd.f32 %v789, %v817
    %v861 = vadd.f32 %v790, %v817
    %v862 = vadd.f32 %v791, %v817
    %v863 = vadd.f32 %v792, %v817
    %v864 = vadd.f32 %v793, %v817
    %v865 = vadd.f32 %v794, %v817
    %v866 = vadd.f32 %v795, %v817
    %v867 = vadd.f32 %v796, %v817
    %v868 = vadd.f32 %v797, %v817
    %v869 = vadd.f32 %v798, %v817
    %v870 = vadd.f32 %v799, %v817
    %v871 = vadd.f32 %v800, %v817
    %v872 = vadd.f32 %v801, %v817
    %v873 = vadd.f32 %v802, %v817
    %v874 = vadd.f32 %v803, %v817
    %v875 = vadd.f32 %v804, %v817
    %v876 = vadd.f32 %v805, %v817
    %v877 = vadd.f32 %v806, %v817
    %v878 = vadd.f32 %v807, %v817
    %v879 = vadd.f32 %v808, %v817
    %v880 = vadd.f32 %v809, %v817
    %v881 = vadd.f32 %v810, %v817
    %v882 = vadd.f32 %v811, %v817
    %v883 = vtanh.pop %v819
    %v884 = vtanh.pop %v820
    %v885 = vtanh.pop %v821
    %v886 = vtanh.pop %v822
    %v887 = vtanh.pop %v823
    %v888 = vtanh.pop %v824
    %v889 = vtanh.pop %v825
    %v890 = vtanh.pop %v826
    %v891 = vtanh.pop %v827
    %v892 = vtanh.pop %v828
    %v893 = vtanh.pop %v829
    %v894 = vtanh.pop %v830
    %v895 = vtanh.pop %v831
    %v896 = vtanh.pop %v832
    %v897 = vtanh.pop %v833
    %v898 = vtanh.pop %v834
    %v899 = vtanh.pop %v835
    %v900 = vtanh.pop %v836
    %v901 = vtanh.pop %v837
    %v902 = vtanh.pop %v838
    %v903 = vtanh.pop %v839
    %v904 = vtanh.pop %v840
    %v905 = vtanh.pop %v841
    %v906 = vtanh.pop %v842
    %v907 = vtanh.pop %v843
    %v908 = vtanh.pop %v844
    %v909 = vtanh.pop %v845
    %v910 = vtanh.pop %v846
    %v911 = vtanh.pop %v847
    %v912 = vtanh.pop %v848
    %v913 = vtanh.pop %v849
    %v914 = vtanh.pop %v850
    %v915 = vtanh.pop %v851
    %v916 = vtanh.pop %v852
    %v917 = vtanh.pop %v853
    %v918 = vtanh.pop %v854
    %v919 = vtanh.pop %v855
    %v920 = vtanh.pop %v856
    %v921 = vtanh.pop %v857
    %v922 = vtanh.pop %v858
    %v923 = vtanh.pop %v859
    %v924 = vtanh.pop %v860
    %v925 = vtanh.pop %v861
    %v926 = vtanh.pop %v862
    %v927 = vtanh.pop %v863
    %v928 = vtanh.pop %v864
    %v929 = vtanh.pop %v865
    %v930 = vtanh.pop %v866
    %v931 = vtanh.pop %v867
    %v932 = vtanh.pop %v868
    %v933 = vtanh.pop %v869
    %v934 = vtanh.pop %v870
    %v935 = vtanh.pop %v871
    %v936 = vtanh.pop %v872
    %v937 = vtanh.pop %v873
    %v938 = vtanh.pop %v874
    %v939 = vtanh.pop %v875
    %v940 = vtanh.pop %v876
    %v941 = vtanh.pop %v877
    %v942 = vtanh.pop %v878
    %v943 = vtanh.pop %v879
    %v944 = vtanh.pop %v880
    %v945 = vtanh.pop %v881
    %v946 = vtanh.pop %v882
    %v947 = vld [vmem:[%s7] sm:$0x1]
    %v949 = vlaneseq
    %v950 = vshrl.u32 %v949, 7
    %v951 = vsub.s32 0, %v950
    %v952 = vrot.slane %v947, %v951
    %v954 = vmul.f32 %v883, %v952
    %v955 = vmul.f32 %v884, %v952
    %v956 = vmul.f32 %v885, %v952
    %v957 = vmul.f32 %v886, %v952
    %v958 = vmul.f32 %v887, %v952
    %v959 = vmul.f32 %v888, %v952
    %v960 = vmul.f32 %v889, %v952
    %v961 = vmul.f32 %v890, %v952
    %v962 = vmul.f32 %v891, %v952
    %v963 = vmul.f32 %v892, %v952
    %v964 = vmul.f32 %v893, %v952
    %v965 = vmul.f32 %v894, %v952
    %v966 = vmul.f32 %v895, %v952
    %v967 = vmul.f32 %v896, %v952
    %v968 = vmul.f32 %v897, %v952
    %v969 = vmul.f32 %v898, %v952
    %v970 = vmul.f32 %v899, %v952
    %v971 = vmul.f32 %v900, %v952
    %v972 = vmul.f32 %v901, %v952
    %v973 = vmul.f32 %v902, %v952
    %v974 = vmul.f32 %v903, %v952
    %v975 = vmul.f32 %v904, %v952
    %v976 = vmul.f32 %v905, %v952
    %v977 = vmul.f32 %v906, %v952
    %v978 = vmul.f32 %v907, %v952
    %v979 = vmul.f32 %v908, %v952
    %v980 = vmul.f32 %v909, %v952
    %v981 = vmul.f32 %v910, %v952
    %v982 = vmul.f32 %v911, %v952
    %v983 = vmul.f32 %v912, %v952
    %v984 = vmul.f32 %v913, %v952
    %v985 = vmul.f32 %v914, %v952
    %v986 = vmul.f32 %v915, %v952
    %v987 = vmul.f32 %v916, %v952
    %v988 = vmul.f32 %v917, %v952
    %v989 = vmul.f32 %v918, %v952
    %v990 = vmul.f32 %v919, %v952
    %v991 = vmul.f32 %v920, %v952
    %v992 = vmul.f32 %v921, %v952
    %v993 = vmul.f32 %v922, %v952
    %v994 = vmul.f32 %v923, %v952
    %v995 = vmul.f32 %v924, %v952
    %v996 = vmul.f32 %v925, %v952
    %v997 = vmul.f32 %v926, %v952
    %v998 = vmul.f32 %v927, %v952
    %v999 = vmul.f32 %v928, %v952
    %v1000 = vmul.f32 %v929, %v952
    %v1001 = vmul.f32 %v930, %v952
    %v1002 = vmul.f32 %v931, %v952
    %v1003 = vmul.f32 %v932, %v952
    %v1004 = vmul.f32 %v933, %v952
    %v1005 = vmul.f32 %v934, %v952
    %v1006 = vmul.f32 %v935, %v952
    %v1007 = vmul.f32 %v936, %v952
    %v1008 = vmul.f32 %v937, %v952
    %v1009 = vmul.f32 %v938, %v952
    %v1010 = vmul.f32 %v939, %v952
    %v1011 = vmul.f32 %v940, %v952
    %v1012 = vmul.f32 %v941, %v952
    %v1013 = vmul.f32 %v942, %v952
    %v1014 = vmul.f32 %v943, %v952
    %v1015 = vmul.f32 %v944, %v952
    %v1016 = vmul.f32 %v945, %v952
    %v1017 = vmul.f32 %v946, %v952
    %v1018 = vsel %vm81, %v954, 0.0
    %1019 = vadd.xlane.f32.xlu0 %v1018
    %v1020 = vpop.xlane.xlu0 %1019
    %v1021 = vsel %vm81, %v955, 0.0
    %1022 = vadd.xlane.f32.xlu0 %v1021
    %v1023 = vpop.xlane.xlu0 %1022
    %v1024 = vsel %vm81, %v956, 0.0
    %1025 = vadd.xlane.f32.xlu0 %v1024
    %v1026 = vpop.xlane.xlu0 %1025
    %v1027 = vsel %vm81, %v957, 0.0
    %1028 = vadd.xlane.f32.xlu0 %v1027
    %v1029 = vpop.xlane.xlu0 %1028
    %v1030 = vsel %vm81, %v958, 0.0
    %1031 = vadd.xlane.f32.xlu0 %v1030
    %v1032 = vpop.xlane.xlu0 %1031
    %v1033 = vsel %vm81, %v959, 0.0
    %1034 = vadd.xlane.f32.xlu0 %v1033
    %v1035 = vpop.xlane.xlu0 %1034
    %v1036 = vsel %vm81, %v960, 0.0
    %1037 = vadd.xlane.f32.xlu0 %v1036
    %v1038 = vpop.xlane.xlu0 %1037
    %v1039 = vsel %vm81, %v961, 0.0
    %1040 = vadd.xlane.f32.xlu0 %v1039
    %v1041 = vpop.xlane.xlu0 %1040
    %v1042 = vsel %vm81, %v962, 0.0
    %1043 = vadd.xlane.f32.xlu0 %v1042
    %v1044 = vpop.xlane.xlu0 %1043
    %v1045 = vsel %vm81, %v963, 0.0
    %1046 = vadd.xlane.f32.xlu0 %v1045
    %v1047 = vpop.xlane.xlu0 %1046
    %v1048 = vsel %vm81, %v964, 0.0
    %1049 = vadd.xlane.f32.xlu0 %v1048
    %v1050 = vpop.xlane.xlu0 %1049
    %v1051 = vsel %vm81, %v965, 0.0
    %1052 = vadd.xlane.f32.xlu0 %v1051
    %v1053 = vpop.xlane.xlu0 %1052
    %v1054 = vsel %vm81, %v966, 0.0
    %1055 = vadd.xlane.f32.xlu0 %v1054
    %v1056 = vpop.xlane.xlu0 %1055
    %v1057 = vsel %vm81, %v967, 0.0
    %1058 = vadd.xlane.f32.xlu0 %v1057
    %v1059 = vpop.xlane.xlu0 %1058
    %v1060 = vsel %vm81, %v968, 0.0
    %1061 = vadd.xlane.f32.xlu0 %v1060
    %v1062 = vpop.xlane.xlu0 %1061
    %v1063 = vsel %vm81, %v969, 0.0
    %1064 = vadd.xlane.f32.xlu0 %v1063
    %v1065 = vpop.xlane.xlu0 %1064
    %v1066 = vsel %vm81, %v970, 0.0
    %1067 = vadd.xlane.f32.xlu0 %v1066
    %v1068 = vpop.xlane.xlu0 %1067
    %v1069 = vsel %vm81, %v971, 0.0
    %1070 = vadd.xlane.f32.xlu0 %v1069
    %v1071 = vpop.xlane.xlu0 %1070
    %v1072 = vsel %vm81, %v972, 0.0
    %1073 = vadd.xlane.f32.xlu0 %v1072
    %v1074 = vpop.xlane.xlu0 %1073
    %v1075 = vsel %vm81, %v973, 0.0
    %1076 = vadd.xlane.f32.xlu0 %v1075
    %v1077 = vpop.xlane.xlu0 %1076
    %v1078 = vsel %vm81, %v974, 0.0
    %1079 = vadd.xlane.f32.xlu0 %v1078
    %v1080 = vpop.xlane.xlu0 %1079
    %v1081 = vsel %vm81, %v975, 0.0
    %1082 = vadd.xlane.f32.xlu0 %v1081
    %v1083 = vpop.xlane.xlu0 %1082
    %v1084 = vsel %vm81, %v976, 0.0
    %1085 = vadd.xlane.f32.xlu0 %v1084
    %v1086 = vpop.xlane.xlu0 %1085
    %v1087 = vsel %vm81, %v977, 0.0
    %1088 = vadd.xlane.f32.xlu0 %v1087
    %v1089 = vpop.xlane.xlu0 %1088
    %v1090 = vsel %vm81, %v978, 0.0
    %1091 = vadd.xlane.f32.xlu0 %v1090
    %v1092 = vpop.xlane.xlu0 %1091
    %v1093 = vsel %vm81, %v979, 0.0
    %1094 = vadd.xlane.f32.xlu0 %v1093
    %v1095 = vpop.xlane.xlu0 %1094
    %v1096 = vsel %vm81, %v980, 0.0
    %1097 = vadd.xlane.f32.xlu0 %v1096
    %v1098 = vpop.xlane.xlu0 %1097
    %v1099 = vsel %vm81, %v981, 0.0
    %1100 = vadd.xlane.f32.xlu0 %v1099
    %v1101 = vpop.xlane.xlu0 %1100
    %v1102 = vsel %vm81, %v982, 0.0
    %1103 = vadd.xlane.f32.xlu0 %v1102
    %v1104 = vpop.xlane.xlu0 %1103
    %v1105 = vsel %vm81, %v983, 0.0
    %1106 = vadd.xlane.f32.xlu0 %v1105
    %v1107 = vpop.xlane.xlu0 %1106
    %v1108 = vsel %vm81, %v984, 0.0
    %1109 = vadd.xlane.f32.xlu0 %v1108
    %v1110 = vpop.xlane.xlu0 %1109
    %v1111 = vsel %vm81, %v985, 0.0
    %1112 = vadd.xlane.f32.xlu0 %v1111
    %v1113 = vpop.xlane.xlu0 %1112
    %v1114 = vsel %vm81, %v986, 0.0
    %1115 = vadd.xlane.f32.xlu0 %v1114
    %v1116 = vpop.xlane.xlu0 %1115
    %v1117 = vsel %vm81, %v987, 0.0
    %1118 = vadd.xlane.f32.xlu0 %v1117
    %v1119 = vpop.xlane.xlu0 %1118
    %v1120 = vsel %vm81, %v988, 0.0
    %1121 = vadd.xlane.f32.xlu0 %v1120
    %v1122 = vpop.xlane.xlu0 %1121
    %v1123 = vsel %vm81, %v989, 0.0
    %1124 = vadd.xlane.f32.xlu0 %v1123
    %v1125 = vpop.xlane.xlu0 %1124
    %v1126 = vsel %vm81, %v990, 0.0
    %1127 = vadd.xlane.f32.xlu0 %v1126
    %v1128 = vpop.xlane.xlu0 %1127
    %v1129 = vsel %vm81, %v991, 0.0
    %1130 = vadd.xlane.f32.xlu0 %v1129
    %v1131 = vpop.xlane.xlu0 %1130
    %v1132 = vsel %vm81, %v992, 0.0
    %1133 = vadd.xlane.f32.xlu0 %v1132
    %v1134 = vpop.xlane.xlu0 %1133
    %v1135 = vsel %vm81, %v993, 0.0
    %1136 = vadd.xlane.f32.xlu0 %v1135
    %v1137 = vpop.xlane.xlu0 %1136
    %v1138 = vsel %vm81, %v994, 0.0
    %1139 = vadd.xlane.f32.xlu0 %v1138
    %v1140 = vpop.xlane.xlu0 %1139
    %v1141 = vsel %vm81, %v995, 0.0
    %1142 = vadd.xlane.f32.xlu0 %v1141
    %v1143 = vpop.xlane.xlu0 %1142
    %v1144 = vsel %vm81, %v996, 0.0
    %1145 = vadd.xlane.f32.xlu0 %v1144
    %v1146 = vpop.xlane.xlu0 %1145
    %v1147 = vsel %vm81, %v997, 0.0
    %1148 = vadd.xlane.f32.xlu0 %v1147
    %v1149 = vpop.xlane.xlu0 %1148
    %v1150 = vsel %vm81, %v998, 0.0
    %1151 = vadd.xlane.f32.xlu0 %v1150
    %v1152 = vpop.xlane.xlu0 %1151
    %v1153 = vsel %vm81, %v999, 0.0
    %1154 = vadd.xlane.f32.xlu0 %v1153
    %v1155 = vpop.xlane.xlu0 %1154
    %v1156 = vsel %vm81, %v1000, 0.0
    %1157 = vadd.xlane.f32.xlu0 %v1156
    %v1158 = vpop.xlane.xlu0 %1157
    %v1159 = vsel %vm81, %v1001, 0.0
    %1160 = vadd.xlane.f32.xlu0 %v1159
    %v1161 = vpop.xlane.xlu0 %1160
    %v1162 = vsel %vm81, %v1002, 0.0
    %1163 = vadd.xlane.f32.xlu0 %v1162
    %v1164 = vpop.xlane.xlu0 %1163
    %v1165 = vsel %vm81, %v1003, 0.0
    %1166 = vadd.xlane.f32.xlu0 %v1165
    %v1167 = vpop.xlane.xlu0 %1166
    %v1168 = vsel %vm81, %v1004, 0.0
    %1169 = vadd.xlane.f32.xlu0 %v1168
    %v1170 = vpop.xlane.xlu0 %1169
    %v1171 = vsel %vm81, %v1005, 0.0
    %1172 = vadd.xlane.f32.xlu0 %v1171
    %v1173 = vpop.xlane.xlu0 %1172
    %v1174 = vsel %vm81, %v1006, 0.0
    %1175 = vadd.xlane.f32.xlu0 %v1174
    %v1176 = vpop.xlane.xlu0 %1175
    %v1177 = vsel %vm81, %v1007, 0.0
    %1178 = vadd.xlane.f32.xlu0 %v1177
    %v1179 = vpop.xlane.xlu0 %1178
    %v1180 = vsel %vm81, %v1008, 0.0
    %1181 = vadd.xlane.f32.xlu0 %v1180
    %v1182 = vpop.xlane.xlu0 %1181
    %v1183 = vsel %vm81, %v1009, 0.0
    %1184 = vadd.xlane.f32.xlu0 %v1183
    %v1185 = vpop.xlane.xlu0 %1184
    %v1186 = vsel %vm81, %v1010, 0.0
    %1187 = vadd.xlane.f32.xlu0 %v1186
    %v1188 = vpop.xlane.xlu0 %1187
    %v1189 = vsel %vm81, %v1011, 0.0
    %1190 = vadd.xlane.f32.xlu0 %v1189
    %v1191 = vpop.xlane.xlu0 %1190
    %v1192 = vsel %vm81, %v1012, 0.0
    %1193 = vadd.xlane.f32.xlu0 %v1192
    %v1194 = vpop.xlane.xlu0 %1193
    %v1195 = vsel %vm81, %v1013, 0.0
    %1196 = vadd.xlane.f32.xlu0 %v1195
    %v1197 = vpop.xlane.xlu0 %1196
    %v1198 = vsel %vm81, %v1014, 0.0
    %1199 = vadd.xlane.f32.xlu0 %v1198
    %v1200 = vpop.xlane.xlu0 %1199
    %v1201 = vsel %vm81, %v1015, 0.0
    %1202 = vadd.xlane.f32.xlu0 %v1201
    %v1203 = vpop.xlane.xlu0 %1202
    %v1204 = vsel %vm81, %v1016, 0.0
    %1205 = vadd.xlane.f32.xlu0 %v1204
    %v1206 = vpop.xlane.xlu0 %1205
    %v1207 = vsel %vm81, %v1017, 0.0
    %1208 = vadd.xlane.f32.xlu0 %v1207
    %v1209 = vpop.xlane.xlu0 %1208
    %v1210 = vlaneseq
    %v1211 = vand.u32 %v1210, 127
    %vm1212 = vcmp.lt.s32.totalorder %v1211, 8
    %v1277 = vlaneseq
    %v1278 = vshrl.u32 %v1277, 7
    %v1279 = vsub.s32 %v1211, %v1278
    %v1280 = vrot.slane %v1020, %v1279
    %v1281 = vadd.s32 %v1211, 4294967288
    %v1282 = vlaneseq
    %v1283 = vshrl.u32 %v1282, 7
    %v1284 = vsub.s32 %v1281, %v1283
    %v1285 = vrot.slane %v1023, %v1284
    %vm1286 = vcmask 130112
    %v1287 = vsel %vm1286, %v1285, %v1280
    %v1288 = vadd.s32 %v1211, 4294967280
    %v1289 = vlaneseq
    %v1290 = vshrl.u32 %v1289, 7
    %v1291 = vsub.s32 %v1288, %v1290
    %v1292 = vrot.slane %v1026, %v1291
    %vm1293 = vcmask 195712
    %v1294 = vsel %vm1293, %v1292, %v1287
    %v1295 = vadd.s32 %v1211, 4294967272
    %v1296 = vlaneseq
    %v1297 = vshrl.u32 %v1296, 7
    %v1298 = vsub.s32 %v1295, %v1297
    %v1299 = vrot.slane %v1029, %v1298
    %vm1300 = vcmask 261312
    %v1301 = vsel %vm1300, %v1299, %v1294
    %v1302 = vadd.s32 %v1211, 4294967264
    %v1303 = vlaneseq
    %v1304 = vshrl.u32 %v1303, 7
    %v1305 = vsub.s32 %v1302, %v1304
    %v1306 = vrot.slane %v1032, %v1305
    %vm1307 = vcmask 326912
    %v1308 = vsel %vm1307, %v1306, %v1301
    %v1309 = vadd.s32 %v1211, 4294967256
    %v1310 = vlaneseq
    %v1311 = vshrl.u32 %v1310, 7
    %v1312 = vsub.s32 %v1309, %v1311
    %v1313 = vrot.slane %v1035, %v1312
    %vm1314 = vcmask 392512
    %v1315 = vsel %vm1314, %v1313, %v1308
    %v1316 = vadd.s32 %v1211, 4294967248
    %v1317 = vlaneseq
    %v1318 = vshrl.u32 %v1317, 7
    %v1319 = vsub.s32 %v1316, %v1318
    %v1320 = vrot.slane %v1038, %v1319
    %vm1321 = vcmask 458112
    %v1322 = vsel %vm1321, %v1320, %v1315
    %v1323 = vadd.s32 %v1211, 4294967240
    %v1324 = vlaneseq
    %v1325 = vshrl.u32 %v1324, 7
    %v1326 = vsub.s32 %v1323, %v1325
    %v1327 = vrot.slane %v1041, %v1326
    %vm1328 = vcmask 523712
    %v1329 = vsel %vm1328, %v1327, %v1322
    %v1330 = vadd.s32 %v1211, 4294967232
    %v1331 = vlaneseq
    %v1332 = vshrl.u32 %v1331, 7
    %v1333 = vsub.s32 %v1330, %v1332
    %v1334 = vrot.slane %v1044, %v1333
    %vm1335 = vcmask 589312
    %v1336 = vsel %vm1335, %v1334, %v1329
    %v1337 = vadd.s32 %v1211, 4294967224
    %v1338 = vlaneseq
    %v1339 = vshrl.u32 %v1338, 7
    %v1340 = vsub.s32 %v1337, %v1339
    %v1341 = vrot.slane %v1047, %v1340
    %vm1342 = vcmask 654912
    %v1343 = vsel %vm1342, %v1341, %v1336
    %v1344 = vadd.s32 %v1211, 4294967216
    %v1345 = vlaneseq
    %v1346 = vshrl.u32 %v1345, 7
    %v1347 = vsub.s32 %v1344, %v1346
    %v1348 = vrot.slane %v1050, %v1347
    %vm1349 = vcmask 720512
    %v1350 = vsel %vm1349, %v1348, %v1343
    %v1351 = vadd.s32 %v1211, 4294967208
    %v1352 = vlaneseq
    %v1353 = vshrl.u32 %v1352, 7
    %v1354 = vsub.s32 %v1351, %v1353
    %v1355 = vrot.slane %v1053, %v1354
    %vm1356 = vcmask 786112
    %v1357 = vsel %vm1356, %v1355, %v1350
    %v1358 = vadd.s32 %v1211, 4294967200
    %v1359 = vlaneseq
    %v1360 = vshrl.u32 %v1359, 7
    %v1361 = vsub.s32 %v1358, %v1360
    %v1362 = vrot.slane %v1056, %v1361
    %vm1363 = vcmask 851712
    %v1364 = vsel %vm1363, %v1362, %v1357
    %v1365 = vadd.s32 %v1211, 4294967192
    %v1366 = vlaneseq
    %v1367 = vshrl.u32 %v1366, 7
    %v1368 = vsub.s32 %v1365, %v1367
    %v1369 = vrot.slane %v1059, %v1368
    %vm1370 = vcmask 917312
    %v1371 = vsel %vm1370, %v1369, %v1364
    %v1372 = vadd.s32 %v1211, 4294967184
    %v1373 = vlaneseq
    %v1374 = vshrl.u32 %v1373, 7
    %v1375 = vsub.s32 %v1372, %v1374
    %v1376 = vrot.slane %v1062, %v1375
    %vm1377 = vcmask 982912
    %v1378 = vsel %vm1377, %v1376, %v1371
    %v1379 = vadd.s32 %v1211, 4294967176
    %v1380 = vlaneseq
    %v1381 = vshrl.u32 %v1380, 7
    %v1382 = vsub.s32 %v1379, %v1381
    %v1383 = vrot.slane %v1065, %v1382
    %vm1384 = vcmask 1048512
    %v1385 = vsel %vm1384, %v1383, %v1378
    %v1386 = vlaneseq
    %v1387 = vshrl.u32 %v1386, 7
    %v1388 = vsub.s32 %v1211, %v1387
    %v1389 = vrot.slane %v1068, %v1388
    %v1390 = vlaneseq
    %v1391 = vshrl.u32 %v1390, 7
    %v1392 = vsub.s32 %v1281, %v1391
    %v1393 = vrot.slane %v1071, %v1392
    %v1394 = vsel %vm1286, %v1393, %v1389
    %v1395 = vlaneseq
    %v1396 = vshrl.u32 %v1395, 7
    %v1397 = vsub.s32 %v1288, %v1396
    %v1398 = vrot.slane %v1074, %v1397
    %v1399 = vsel %vm1293, %v1398, %v1394
    %v1400 = vlaneseq
    %v1401 = vshrl.u32 %v1400, 7
    %v1402 = vsub.s32 %v1295, %v1401
    %v1403 = vrot.slane %v1077, %v1402
    %v1404 = vsel %vm1300, %v1403, %v1399
    %v1405 = vlaneseq
    %v1406 = vshrl.u32 %v1405, 7
    %v1407 = vsub.s32 %v1302, %v1406
    %v1408 = vrot.slane %v1080, %v1407
    %v1409 = vsel %vm1307, %v1408, %v1404
    %v1410 = vlaneseq
    %v1411 = vshrl.u32 %v1410, 7
    %v1412 = vsub.s32 %v1309, %v1411
    %v1413 = vrot.slane %v1083, %v1412
    %v1414 = vsel %vm1314, %v1413, %v1409
    %v1415 = vlaneseq
    %v1416 = vshrl.u32 %v1415, 7
    %v1417 = vsub.s32 %v1316, %v1416
    %v1418 = vrot.slane %v1086, %v1417
    %v1419 = vsel %vm1321, %v1418, %v1414
    %v1420 = vlaneseq
    %v1421 = vshrl.u32 %v1420, 7
    %v1422 = vsub.s32 %v1323, %v1421
    %v1423 = vrot.slane %v1089, %v1422
    %v1424 = vsel %vm1328, %v1423, %v1419
    %v1425 = vlaneseq
    %v1426 = vshrl.u32 %v1425, 7
    %v1427 = vsub.s32 %v1330, %v1426
    %v1428 = vrot.slane %v1092, %v1427
    %v1429 = vsel %vm1335, %v1428, %v1424
    %v1430 = vlaneseq
    %v1431 = vshrl.u32 %v1430, 7
    %v1432 = vsub.s32 %v1337, %v1431
    %v1433 = vrot.slane %v1095, %v1432
    %v1434 = vsel %vm1342, %v1433, %v1429
    %v1435 = vlaneseq
    %v1436 = vshrl.u32 %v1435, 7
    %v1437 = vsub.s32 %v1344, %v1436
    %v1438 = vrot.slane %v1098, %v1437
    %v1439 = vsel %vm1349, %v1438, %v1434
    %v1440 = vlaneseq
    %v1441 = vshrl.u32 %v1440, 7
    %v1442 = vsub.s32 %v1351, %v1441
    %v1443 = vrot.slane %v1101, %v1442
    %v1444 = vsel %vm1356, %v1443, %v1439
    %v1445 = vlaneseq
    %v1446 = vshrl.u32 %v1445, 7
    %v1447 = vsub.s32 %v1358, %v1446
    %v1448 = vrot.slane %v1104, %v1447
    %v1449 = vsel %vm1363, %v1448, %v1444
    %v1450 = vlaneseq
    %v1451 = vshrl.u32 %v1450, 7
    %v1452 = vsub.s32 %v1365, %v1451
    %v1453 = vrot.slane %v1107, %v1452
    %v1454 = vsel %vm1370, %v1453, %v1449
    %v1455 = vlaneseq
    %v1456 = vshrl.u32 %v1455, 7
    %v1457 = vsub.s32 %v1372, %v1456
    %v1458 = vrot.slane %v1110, %v1457
    %v1459 = vsel %vm1377, %v1458, %v1454
    %v1460 = vlaneseq
    %v1461 = vshrl.u32 %v1460, 7
    %v1462 = vsub.s32 %v1379, %v1461
    %v1463 = vrot.slane %v1113, %v1462
    %v1464 = vsel %vm1384, %v1463, %v1459
    %v1465 = vlaneseq
    %v1466 = vshrl.u32 %v1465, 7
    %v1467 = vsub.s32 %v1211, %v1466
    %v1468 = vrot.slane %v1116, %v1467
    %v1469 = vlaneseq
    %v1470 = vshrl.u32 %v1469, 7
    %v1471 = vsub.s32 %v1281, %v1470
    %v1472 = vrot.slane %v1119, %v1471
    %v1473 = vsel %vm1286, %v1472, %v1468
    %v1474 = vlaneseq
    %v1475 = vshrl.u32 %v1474, 7
    %v1476 = vsub.s32 %v1288, %v1475
    %v1477 = vrot.slane %v1122, %v1476
    %v1478 = vsel %vm1293, %v1477, %v1473
    %v1479 = vlaneseq
    %v1480 = vshrl.u32 %v1479, 7
    %v1481 = vsub.s32 %v1295, %v1480
    %v1482 = vrot.slane %v1125, %v1481
    %v1483 = vsel %vm1300, %v1482, %v1478
    %v1484 = vlaneseq
    %v1485 = vshrl.u32 %v1484, 7
    %v1486 = vsub.s32 %v1302, %v1485
    %v1487 = vrot.slane %v1128, %v1486
    %v1488 = vsel %vm1307, %v1487, %v1483
    %v1489 = vlaneseq
    %v1490 = vshrl.u32 %v1489, 7
    %v1491 = vsub.s32 %v1309, %v1490
    %v1492 = vrot.slane %v1131, %v1491
    %v1493 = vsel %vm1314, %v1492, %v1488
    %v1494 = vlaneseq
    %v1495 = vshrl.u32 %v1494, 7
    %v1496 = vsub.s32 %v1316, %v1495
    %v1497 = vrot.slane %v1134, %v1496
    %v1498 = vsel %vm1321, %v1497, %v1493
    %v1499 = vlaneseq
    %v1500 = vshrl.u32 %v1499, 7
    %v1501 = vsub.s32 %v1323, %v1500
    %v1502 = vrot.slane %v1137, %v1501
    %v1503 = vsel %vm1328, %v1502, %v1498
    %v1504 = vlaneseq
    %v1505 = vshrl.u32 %v1504, 7
    %v1506 = vsub.s32 %v1330, %v1505
    %v1507 = vrot.slane %v1140, %v1506
    %v1508 = vsel %vm1335, %v1507, %v1503
    %v1509 = vlaneseq
    %v1510 = vshrl.u32 %v1509, 7
    %v1511 = vsub.s32 %v1337, %v1510
    %v1512 = vrot.slane %v1143, %v1511
    %v1513 = vsel %vm1342, %v1512, %v1508
    %v1514 = vlaneseq
    %v1515 = vshrl.u32 %v1514, 7
    %v1516 = vsub.s32 %v1344, %v1515
    %v1517 = vrot.slane %v1146, %v1516
    %v1518 = vsel %vm1349, %v1517, %v1513
    %v1519 = vlaneseq
    %v1520 = vshrl.u32 %v1519, 7
    %v1521 = vsub.s32 %v1351, %v1520
    %v1522 = vrot.slane %v1149, %v1521
    %v1523 = vsel %vm1356, %v1522, %v1518
    %v1524 = vlaneseq
    %v1525 = vshrl.u32 %v1524, 7
    %v1526 = vsub.s32 %v1358, %v1525
    %v1527 = vrot.slane %v1152, %v1526
    %v1528 = vsel %vm1363, %v1527, %v1523
    %v1529 = vlaneseq
    %v1530 = vshrl.u32 %v1529, 7
    %v1531 = vsub.s32 %v1365, %v1530
    %v1532 = vrot.slane %v1155, %v1531
    %v1533 = vsel %vm1370, %v1532, %v1528
    %v1534 = vlaneseq
    %v1535 = vshrl.u32 %v1534, 7
    %v1536 = vsub.s32 %v1372, %v1535
    %v1537 = vrot.slane %v1158, %v1536
    %v1538 = vsel %vm1377, %v1537, %v1533
    %v1539 = vlaneseq
    %v1540 = vshrl.u32 %v1539, 7
    %v1541 = vsub.s32 %v1379, %v1540
    %v1542 = vrot.slane %v1161, %v1541
    %v1543 = vsel %vm1384, %v1542, %v1538
    %v1544 = vlaneseq
    %v1545 = vshrl.u32 %v1544, 7
    %v1546 = vsub.s32 %v1211, %v1545
    %v1547 = vrot.slane %v1164, %v1546
    %v1548 = vlaneseq
    %v1549 = vshrl.u32 %v1548, 7
    %v1550 = vsub.s32 %v1281, %v1549
    %v1551 = vrot.slane %v1167, %v1550
    %v1552 = vsel %vm1286, %v1551, %v1547
    %v1553 = vlaneseq
    %v1554 = vshrl.u32 %v1553, 7
    %v1555 = vsub.s32 %v1288, %v1554
    %v1556 = vrot.slane %v1170, %v1555
    %v1557 = vsel %vm1293, %v1556, %v1552
    %v1558 = vlaneseq
    %v1559 = vshrl.u32 %v1558, 7
    %v1560 = vsub.s32 %v1295, %v1559
    %v1561 = vrot.slane %v1173, %v1560
    %v1562 = vsel %vm1300, %v1561, %v1557
    %v1563 = vlaneseq
    %v1564 = vshrl.u32 %v1563, 7
    %v1565 = vsub.s32 %v1302, %v1564
    %v1566 = vrot.slane %v1176, %v1565
    %v1567 = vsel %vm1307, %v1566, %v1562
    %v1568 = vlaneseq
    %v1569 = vshrl.u32 %v1568, 7
    %v1570 = vsub.s32 %v1309, %v1569
    %v1571 = vrot.slane %v1179, %v1570
    %v1572 = vsel %vm1314, %v1571, %v1567
    %v1573 = vlaneseq
    %v1574 = vshrl.u32 %v1573, 7
    %v1575 = vsub.s32 %v1316, %v1574
    %v1576 = vrot.slane %v1182, %v1575
    %v1577 = vsel %vm1321, %v1576, %v1572
    %v1578 = vlaneseq
    %v1579 = vshrl.u32 %v1578, 7
    %v1580 = vsub.s32 %v1323, %v1579
    %v1581 = vrot.slane %v1185, %v1580
    %v1582 = vsel %vm1328, %v1581, %v1577
    %v1583 = vlaneseq
    %v1584 = vshrl.u32 %v1583, 7
    %v1585 = vsub.s32 %v1330, %v1584
    %v1586 = vrot.slane %v1188, %v1585
    %v1587 = vsel %vm1335, %v1586, %v1582
    %v1588 = vlaneseq
    %v1589 = vshrl.u32 %v1588, 7
    %v1590 = vsub.s32 %v1337, %v1589
    %v1591 = vrot.slane %v1191, %v1590
    %v1592 = vsel %vm1342, %v1591, %v1587
    %v1593 = vlaneseq
    %v1594 = vshrl.u32 %v1593, 7
    %v1595 = vsub.s32 %v1344, %v1594
    %v1596 = vrot.slane %v1194, %v1595
    %v1597 = vsel %vm1349, %v1596, %v1592
    %v1598 = vlaneseq
    %v1599 = vshrl.u32 %v1598, 7
    %v1600 = vsub.s32 %v1351, %v1599
    %v1601 = vrot.slane %v1197, %v1600
    %v1602 = vsel %vm1356, %v1601, %v1597
    %v1603 = vlaneseq
    %v1604 = vshrl.u32 %v1603, 7
    %v1605 = vsub.s32 %v1358, %v1604
    %v1606 = vrot.slane %v1200, %v1605
    %v1607 = vsel %vm1363, %v1606, %v1602
    %v1608 = vlaneseq
    %v1609 = vshrl.u32 %v1608, 7
    %v1610 = vsub.s32 %v1365, %v1609
    %v1611 = vrot.slane %v1203, %v1610
    %v1612 = vsel %vm1370, %v1611, %v1607
    %v1613 = vlaneseq
    %v1614 = vshrl.u32 %v1613, 7
    %v1615 = vsub.s32 %v1372, %v1614
    %v1616 = vrot.slane %v1206, %v1615
    %v1617 = vsel %vm1377, %v1616, %v1612
    %v1618 = vlaneseq
    %v1619 = vshrl.u32 %v1618, 7
    %v1620 = vsub.s32 %v1379, %v1619
    %v1621 = vrot.slane %v1209, %v1620
    %v1622 = vsel %vm1384, %v1621, %v1617
    %v1627 = vsel %vm1212, %v1385, -inf
    %v1628 = vsel %vm1212, %v1464, -inf
    %v1629 = vsel %vm1212, %v1543, -inf
    %v1630 = vsel %vm1212, %v1622, -inf
    %vm1631 = vcmask 1040384
    %v1632 = vsel %vm1631, %v1627, -inf
    %1633 = vmax.xlane.f32.xlu0 %v1632
    %v1634 = vpop.xlane.xlu0 %1633
    %v1635 = vsel %vm1631, %v1628, -inf
    %1636 = vmax.xlane.f32.xlu0 %v1635
    %v1637 = vpop.xlane.xlu0 %1636
    %v1638 = vsel %vm1631, %v1629, -inf
    %1639 = vmax.xlane.f32.xlu0 %v1638
    %v1640 = vpop.xlane.xlu0 %1639
    %v1641 = vsel %vm1631, %v1630, -inf
    %1642 = vmax.xlane.f32.xlu0 %v1641
    %v1643 = vpop.xlane.xlu0 %1642
    %v1644 = vsub.f32 %v1627, %v1634
    %v1645 = vsub.f32 %v1628, %v1637
    %v1646 = vsub.f32 %v1629, %v1640
    %v1647 = vsub.f32 %v1630, %v1643
    %v1648 = vmul.f32 %v1644, 1.442695
    %v1649 = vpow.pop %v1648
    %v1650 = vmul.f32 %v1645, 1.442695
    %v1651 = vpow.pop %v1650
    %v1652 = vmul.f32 %v1646, 1.442695
    %v1653 = vpow.pop %v1652
    %v1654 = vmul.f32 %v1647, 1.442695
    %v1655 = vpow.pop %v1654
    %v1656 = vsel %vm1631, %v1649, 0.0
    %1657 = vadd.xlane.f32.xlu0 %v1656
    %v1658 = vpop.xlane.xlu0 %1657
    %v1659 = vsel %vm1631, %v1651, 0.0
    %1660 = vadd.xlane.f32.xlu0 %v1659
    %v1661 = vpop.xlane.xlu0 %1660
    %v1662 = vsel %vm1631, %v1653, 0.0
    %1663 = vadd.xlane.f32.xlu0 %v1662
    %v1664 = vpop.xlane.xlu0 %1663
    %v1665 = vsel %vm1631, %v1655, 0.0
    %1666 = vadd.xlane.f32.xlu0 %v1665
    %v1667 = vpop.xlane.xlu0 %1666
    %v1668 = vrcp.pop %v1658
    %v1669 = vrcp.pop %v1661
    %v1670 = vrcp.pop %v1664
    %v1671 = vrcp.pop %v1667
    %v1672 = vmul.f32 %v1649, %v1668
    %v1673 = vmul.f32 %v1651, %v1669
    %v1674 = vmul.f32 %v1653, %v1670
    %v1675 = vmul.f32 %v1655, %v1671
    %v1676 = vmul.f32 %v1672, %v232
    %v1677 = vmul.f32 %v1673, %v233
    %v1678 = vmul.f32 %v1674, %v234
    %v1679 = vmul.f32 %v1675, %v235
    %v1680 = vadd.f32 %v228, %v1676
    %v1681 = vadd.f32 %v229, %v1677
    %v1682 = vadd.f32 %v230, %v1678
    %v1683 = vadd.f32 %v231, %v1679
    %v1684 = vld [vmem:[%s1] sm:$0xff]
    %v1685 = vld [vmem:[%s1 + $0x8] sm:$0xff]
    %v1686 = vld [vmem:[%s1 + $0x10] sm:$0xff]
    %v1687 = vld [vmem:[%s1 + $0x18] sm:$0xff]
    %v1688 = vld [vmem:[%s1 + $0x20] sm:$0xff]
    %v1689 = vld [vmem:[%s1 + $0x28] sm:$0xff]
    %v1690 = vld [vmem:[%s1 + $0x30] sm:$0xff]
    %v1691 = vld [vmem:[%s1 + $0x38] sm:$0xff]
    %v1692 = vld [vmem:[%s1 + $0x40] sm:$0xff]
    %v1693 = vld [vmem:[%s1 + $0x48] sm:$0xff]
    %v1694 = vld [vmem:[%s1 + $0x50] sm:$0xff]
    %v1695 = vld [vmem:[%s1 + $0x58] sm:$0xff]
    %v1696 = vld [vmem:[%s1 + $0x60] sm:$0xff]
    %v1697 = vld [vmem:[%s1 + $0x68] sm:$0xff]
    %v1698 = vld [vmem:[%s1 + $0x70] sm:$0xff]
    %v1699 = vld [vmem:[%s1 + $0x78] sm:$0xff]
    %v1700 = vld [vmem:[%s1 + $0x80] sm:$0xff]
    %v1701 = vld [vmem:[%s1 + $0x88] sm:$0xff]
    %v1702 = vld [vmem:[%s1 + $0x90] sm:$0xff]
    %v1703 = vld [vmem:[%s1 + $0x98] sm:$0xff]
    %v1704 = vld [vmem:[%s1 + $0xa0] sm:$0xff]
    %v1705 = vld [vmem:[%s1 + $0xa8] sm:$0xff]
    %v1706 = vld [vmem:[%s1 + $0xb0] sm:$0xff]
    %v1707 = vld [vmem:[%s1 + $0xb8] sm:$0xff]
    %v1708 = vld [vmem:[%s1 + $0xc0] sm:$0xff]
    %v1709 = vld [vmem:[%s1 + $0xc8] sm:$0xff]
    %v1710 = vld [vmem:[%s1 + $0xd0] sm:$0xff]
    %v1711 = vld [vmem:[%s1 + $0xd8] sm:$0xff]
    %v1712 = vld [vmem:[%s1 + $0xe0] sm:$0xff]
    %v1713 = vld [vmem:[%s1 + $0xe8] sm:$0xff]
    %v1714 = vld [vmem:[%s1 + $0xf0] sm:$0xff]
    %v1715 = vld [vmem:[%s1 + $0xf8] sm:$0xff]
    %v1716 = vld [vmem:[%s1 + $0x100] sm:$0xff]
    %v1717 = vld [vmem:[%s1 + $0x108] sm:$0xff]
    %v1718 = vld [vmem:[%s1 + $0x110] sm:$0xff]
    %v1719 = vld [vmem:[%s1 + $0x118] sm:$0xff]
    %v1720 = vld [vmem:[%s1 + $0x120] sm:$0xff]
    %v1721 = vld [vmem:[%s1 + $0x128] sm:$0xff]
    %v1722 = vld [vmem:[%s1 + $0x130] sm:$0xff]
    %v1723 = vld [vmem:[%s1 + $0x138] sm:$0xff]
    %v1724 = vld [vmem:[%s1 + $0x140] sm:$0xff]
    %v1725 = vld [vmem:[%s1 + $0x148] sm:$0xff]
    %v1726 = vld [vmem:[%s1 + $0x150] sm:$0xff]
    %v1727 = vld [vmem:[%s1 + $0x158] sm:$0xff]
    %v1728 = vld [vmem:[%s1 + $0x160] sm:$0xff]
    %v1729 = vld [vmem:[%s1 + $0x168] sm:$0xff]
    %v1730 = vld [vmem:[%s1 + $0x170] sm:$0xff]
    %v1731 = vld [vmem:[%s1 + $0x178] sm:$0xff]
    %v1732 = vld [vmem:[%s1 + $0x180] sm:$0xff]
    %v1733 = vld [vmem:[%s1 + $0x188] sm:$0xff]
    %v1734 = vld [vmem:[%s1 + $0x190] sm:$0xff]
    %v1735 = vld [vmem:[%s1 + $0x198] sm:$0xff]
    %v1736 = vld [vmem:[%s1 + $0x1a0] sm:$0xff]
    %v1737 = vld [vmem:[%s1 + $0x1a8] sm:$0xff]
    %v1738 = vld [vmem:[%s1 + $0x1b0] sm:$0xff]
    %v1739 = vld [vmem:[%s1 + $0x1b8] sm:$0xff]
    %v1740 = vld [vmem:[%s1 + $0x1c0] sm:$0xff]
    %v1741 = vld [vmem:[%s1 + $0x1c8] sm:$0xff]
    %v1742 = vld [vmem:[%s1 + $0x1d0] sm:$0xff]
    %v1743 = vld [vmem:[%s1 + $0x1d8] sm:$0xff]
    %v1744 = vld [vmem:[%s1 + $0x1e0] sm:$0xff]
    %v1745 = vld [vmem:[%s1 + $0x1e8] sm:$0xff]
    %v1746 = vld [vmem:[%s1 + $0x1f0] sm:$0xff]
    %v1747 = vld [vmem:[%s1 + $0x1f8] sm:$0xff]
    %1748 = vmatprep.subr.mxu0 0.0
    %1749 = vmatpush1.msra.mxu0 %v1699
    %1750 = vmatprep.subr.mxu0 0.0
    %1751 = vmatpush1.msra.mxu0 %v1698
    %1752 = vmatprep.subr.mxu0 0.0
    %1753 = vmatpush1.msra.mxu0 %v1697
    %1754 = vmatprep.subr.mxu0 0.0
    %1755 = vmatpush1.msra.mxu0 %v1696
    %1756 = vmatprep.subr.mxu0 0.0
    %1757 = vmatpush1.msra.mxu0 %v1695
    %1758 = vmatprep.subr.mxu0 0.0
    %1759 = vmatpush1.msra.mxu0 %v1694
    %1760 = vmatprep.subr.mxu0 0.0
    %1761 = vmatpush1.msra.mxu0 %v1693
    %1762 = vmatprep.subr.mxu0 0.0
    %1763 = vmatpush1.msra.mxu0 %v1692
    %1764 = vmatprep.subr.mxu0 0.0
    %1765 = vmatpush1.msra.mxu0 %v1691
    %1766 = vmatprep.subr.mxu0 0.0
    %1767 = vmatpush1.msra.mxu0 %v1690
    %1768 = vmatprep.subr.mxu0 0.0
    %1769 = vmatpush1.msra.mxu0 %v1689
    %1770 = vmatprep.subr.mxu0 0.0
    %1771 = vmatpush1.msra.mxu0 %v1688
    %1772 = vmatprep.subr.mxu0 0.0
    %1773 = vmatpush1.msra.mxu0 %v1687
    %1774 = vmatprep.subr.mxu0 0.0
    %1775 = vmatpush1.msra.mxu0 %v1686
    %1776 = vmatprep.subr.mxu0 0.0
    %1777 = vmatpush1.msra.mxu0 %v1685
    %1778 = vmatprep.subr.mxu0 0.0
    %1779 = vmatpush1.msra.mxu0 %v1684
    %1780 = vmatprep.subr.mxu0 0.0
    %1781 = vmatpush2.msra.mxu0 0.0
    %1782 = vmatprep.subr.mxu0 0.0
    %1783 = vmatpush2.msra.mxu0 0.0
    %1784 = vmatprep.subr.mxu0 0.0
    %1785 = vmatpush2.msra.mxu0 0.0
    %1786 = vmatprep.subr.mxu0 0.0
    %1787 = vmatpush2.msra.mxu0 0.0
    %1788 = vmatprep.subr.mxu0 0.0
    %1789 = vmatpush2.msra.mxu0 0.0
    %1790 = vmatprep.subr.mxu0 0.0
    %1791 = vmatpush2.msra.mxu0 0.0
    %1792 = vmatprep.subr.mxu0 0.0
    %1793 = vmatpush2.msra.mxu0 0.0
    %1794 = vmatprep.subr.mxu0 0.0
    %1795 = vmatpush2.msra.mxu0 0.0
    %1796 = vmatprep.subr.mxu0 0.0
    %1797 = vmatpush2.msra.mxu0 0.0
    %1798 = vmatprep.subr.mxu0 0.0
    %1799 = vmatpush2.msra.mxu0 0.0
    %1800 = vmatprep.subr.mxu0 0.0
    %1801 = vmatpush2.msra.mxu0 0.0
    %1802 = vmatprep.subr.mxu0 0.0
    %1803 = vmatpush2.msra.mxu0 0.0
    %1804 = vmatprep.subr.mxu0 0.0
    %1805 = vmatpush2.msra.mxu0 0.0
    %1806 = vmatprep.subr.mxu0 0.0
    %1807 = vmatpush2.msra.mxu0 0.0
    %1808 = vmatprep.subr.mxu0 0.0
    %1809 = vmatpush2.msra.mxu0 0.0
    %1810 = vmatprep.subr.mxu0 0.0
    %1811 = vmatpush2.msra.mxu0 0.0
    %1812 = vmatprep.mubr.f32.mxu0 0.0
    %1813 = vmatmul.mubr.f32.gmra.mxu0 %v1676
    %v1814 = vpop.f32.mrf.mxu0
    %v1815 = vadd.f32 0.0, %v1814
    %v1816 = vpop.f32.mrf.mxu0
    %1817 = vdwg.mxu0
    %1818 = vmatprep.subr.mxu0 0.0
    %1819 = vmatpush1.msra.mxu0 %v1715
    %1820 = vmatprep.subr.mxu0 0.0
    %1821 = vmatpush1.msra.mxu0 %v1714
    %1822 = vmatprep.subr.mxu0 0.0
    %1823 = vmatpush1.msra.mxu0 %v1713
    %1824 = vmatprep.subr.mxu0 0.0
    %1825 = vmatpush1.msra.mxu0 %v1712
    %1826 = vmatprep.subr.mxu0 0.0
    %1827 = vmatpush1.msra.mxu0 %v1711
    %1828 = vmatprep.subr.mxu0 0.0
    %1829 = vmatpush1.msra.mxu0 %v1710
    %1830 = vmatprep.subr.mxu0 0.0
    %1831 = vmatpush1.msra.mxu0 %v1709
    %1832 = vmatprep.subr.mxu0 0.0
    %1833 = vmatpush1.msra.mxu0 %v1708
    %1834 = vmatprep.subr.mxu0 0.0
    %1835 = vmatpush1.msra.mxu0 %v1707
    %1836 = vmatprep.subr.mxu0 0.0
    %1837 = vmatpush1.msra.mxu0 %v1706
    %1838 = vmatprep.subr.mxu0 0.0
    %1839 = vmatpush1.msra.mxu0 %v1705
    %1840 = vmatprep.subr.mxu0 0.0
    %1841 = vmatpush1.msra.mxu0 %v1704
    %1842 = vmatprep.subr.mxu0 0.0
    %1843 = vmatpush1.msra.mxu0 %v1703
    %1844 = vmatprep.subr.mxu0 0.0
    %1845 = vmatpush1.msra.mxu0 %v1702
    %1846 = vmatprep.subr.mxu0 0.0
    %1847 = vmatpush1.msra.mxu0 %v1701
    %1848 = vmatprep.subr.mxu0 0.0
    %1849 = vmatpush1.msra.mxu0 %v1700
    %1850 = vmatprep.subr.mxu0 0.0
    %1851 = vmatpush2.msra.mxu0 0.0
    %1852 = vmatprep.subr.mxu0 0.0
    %1853 = vmatpush2.msra.mxu0 0.0
    %1854 = vmatprep.subr.mxu0 0.0
    %1855 = vmatpush2.msra.mxu0 0.0
    %1856 = vmatprep.subr.mxu0 0.0
    %1857 = vmatpush2.msra.mxu0 0.0
    %1858 = vmatprep.subr.mxu0 0.0
    %1859 = vmatpush2.msra.mxu0 0.0
    %1860 = vmatprep.subr.mxu0 0.0
    %1861 = vmatpush2.msra.mxu0 0.0
    %1862 = vmatprep.subr.mxu0 0.0
    %1863 = vmatpush2.msra.mxu0 0.0
    %1864 = vmatprep.subr.mxu0 0.0
    %1865 = vmatpush2.msra.mxu0 0.0
    %1866 = vmatprep.subr.mxu0 0.0
    %1867 = vmatpush2.msra.mxu0 0.0
    %1868 = vmatprep.subr.mxu0 0.0
    %1869 = vmatpush2.msra.mxu0 0.0
    %1870 = vmatprep.subr.mxu0 0.0
    %1871 = vmatpush2.msra.mxu0 0.0
    %1872 = vmatprep.subr.mxu0 0.0
    %1873 = vmatpush2.msra.mxu0 0.0
    %1874 = vmatprep.subr.mxu0 0.0
    %1875 = vmatpush2.msra.mxu0 0.0
    %1876 = vmatprep.subr.mxu0 0.0
    %1877 = vmatpush2.msra.mxu0 0.0
    %1878 = vmatprep.subr.mxu0 0.0
    %1879 = vmatpush2.msra.mxu0 0.0
    %1880 = vmatprep.subr.mxu0 0.0
    %1881 = vmatpush2.msra.mxu0 0.0
    %1882 = vmatprep.mubr.f32.mxu0 0.0
    %1883 = vmatmul.mubr.f32.gmra.mxu0 %v1677
    %v1884 = vpop.f32.mrf.mxu0
    %v1885 = vadd.f32 0.0, %v1884
    %v1886 = vpop.f32.mrf.mxu0
    %1887 = vdwg.mxu0
    %1888 = vmatprep.subr.mxu0 0.0
    %1889 = vmatpush1.msra.mxu0 %v1731
    %1890 = vmatprep.subr.mxu0 0.0
    %1891 = vmatpush1.msra.mxu0 %v1730
    %1892 = vmatprep.subr.mxu0 0.0
    %1893 = vmatpush1.msra.mxu0 %v1729
    %1894 = vmatprep.subr.mxu0 0.0
    %1895 = vmatpush1.msra.mxu0 %v1728
    %1896 = vmatprep.subr.mxu0 0.0
    %1897 = vmatpush1.msra.mxu0 %v1727
    %1898 = vmatprep.subr.mxu0 0.0
    %1899 = vmatpush1.msra.mxu0 %v1726
    %1900 = vmatprep.subr.mxu0 0.0
    %1901 = vmatpush1.msra.mxu0 %v1725
    %1902 = vmatprep.subr.mxu0 0.0
    %1903 = vmatpush1.msra.mxu0 %v1724
    %1904 = vmatprep.subr.mxu0 0.0
    %1905 = vmatpush1.msra.mxu0 %v1723
    %1906 = vmatprep.subr.mxu0 0.0
    %1907 = vmatpush1.msra.mxu0 %v1722
    %1908 = vmatprep.subr.mxu0 0.0
    %1909 = vmatpush1.msra.mxu0 %v1721
    %1910 = vmatprep.subr.mxu0 0.0
    %1911 = vmatpush1.msra.mxu0 %v1720
    %1912 = vmatprep.subr.mxu0 0.0
    %1913 = vmatpush1.msra.mxu0 %v1719
    %1914 = vmatprep.subr.mxu0 0.0
    %1915 = vmatpush1.msra.mxu0 %v1718
    %1916 = vmatprep.subr.mxu0 0.0
    %1917 = vmatpush1.msra.mxu0 %v1717
    %1918 = vmatprep.subr.mxu0 0.0
    %1919 = vmatpush1.msra.mxu0 %v1716
    %1920 = vmatprep.subr.mxu0 0.0
    %1921 = vmatpush2.msra.mxu0 0.0
    %1922 = vmatprep.subr.mxu0 0.0
    %1923 = vmatpush2.msra.mxu0 0.0
    %1924 = vmatprep.subr.mxu0 0.0
    %1925 = vmatpush2.msra.mxu0 0.0
    %1926 = vmatprep.subr.mxu0 0.0
    %1927 = vmatpush2.msra.mxu0 0.0
    %1928 = vmatprep.subr.mxu0 0.0
    %1929 = vmatpush2.msra.mxu0 0.0
    %1930 = vmatprep.subr.mxu0 0.0
    %1931 = vmatpush2.msra.mxu0 0.0
    %1932 = vmatprep.subr.mxu0 0.0
    %1933 = vmatpush2.msra.mxu0 0.0
    %1934 = vmatprep.subr.mxu0 0.0
    %1935 = vmatpush2.msra.mxu0 0.0
    %1936 = vmatprep.subr.mxu0 0.0
    %1937 = vmatpush2.msra.mxu0 0.0
    %1938 = vmatprep.subr.mxu0 0.0
    %1939 = vmatpush2.msra.mxu0 0.0
    %1940 = vmatprep.subr.mxu0 0.0
    %1941 = vmatpush2.msra.mxu0 0.0
    %1942 = vmatprep.subr.mxu0 0.0
    %1943 = vmatpush2.msra.mxu0 0.0
    %1944 = vmatprep.subr.mxu0 0.0
    %1945 = vmatpush2.msra.mxu0 0.0
    %1946 = vmatprep.subr.mxu0 0.0
    %1947 = vmatpush2.msra.mxu0 0.0
    %1948 = vmatprep.subr.mxu0 0.0
    %1949 = vmatpush2.msra.mxu0 0.0
    %1950 = vmatprep.subr.mxu0 0.0
    %1951 = vmatpush2.msra.mxu0 0.0
    %1952 = vmatprep.mubr.f32.mxu0 0.0
    %1953 = vmatmul.mubr.f32.gmra.mxu0 %v1678
    %v1954 = vpop.f32.mrf.mxu0
    %v1955 = vadd.f32 0.0, %v1954
    %v1956 = vpop.f32.mrf.mxu0
    %1957 = vdwg.mxu0
    %1958 = vmatprep.subr.mxu0 0.0
    %1959 = vmatpush1.msra.mxu0 %v1747
    %1960 = vmatprep.subr.mxu0 0.0
    %1961 = vmatpush1.msra.mxu0 %v1746
    %1962 = vmatprep.subr.mxu0 0.0
    %1963 = vmatpush1.msra.mxu0 %v1745
    %1964 = vmatprep.subr.mxu0 0.0
    %1965 = vmatpush1.msra.mxu0 %v1744
    %1966 = vmatprep.subr.mxu0 0.0
    %1967 = vmatpush1.msra.mxu0 %v1743
    %1968 = vmatprep.subr.mxu0 0.0
    %1969 = vmatpush1.msra.mxu0 %v1742
    %1970 = vmatprep.subr.mxu0 0.0
    %1971 = vmatpush1.msra.mxu0 %v1741
    %1972 = vmatprep.subr.mxu0 0.0
    %1973 = vmatpush1.msra.mxu0 %v1740
    %1974 = vmatprep.subr.mxu0 0.0
    %1975 = vmatpush1.msra.mxu0 %v1739
    %1976 = vmatprep.subr.mxu0 0.0
    %1977 = vmatpush1.msra.mxu0 %v1738
    %1978 = vmatprep.subr.mxu0 0.0
    %1979 = vmatpush1.msra.mxu0 %v1737
    %1980 = vmatprep.subr.mxu0 0.0
    %1981 = vmatpush1.msra.mxu0 %v1736
    %1982 = vmatprep.subr.mxu0 0.0
    %1983 = vmatpush1.msra.mxu0 %v1735
    %1984 = vmatprep.subr.mxu0 0.0
    %1985 = vmatpush1.msra.mxu0 %v1734
    %1986 = vmatprep.subr.mxu0 0.0
    %1987 = vmatpush1.msra.mxu0 %v1733
    %1988 = vmatprep.subr.mxu0 0.0
    %1989 = vmatpush1.msra.mxu0 %v1732
    %1990 = vmatprep.subr.mxu0 0.0
    %1991 = vmatpush2.msra.mxu0 0.0
    %1992 = vmatprep.subr.mxu0 0.0
    %1993 = vmatpush2.msra.mxu0 0.0
    %1994 = vmatprep.subr.mxu0 0.0
    %1995 = vmatpush2.msra.mxu0 0.0
    %1996 = vmatprep.subr.mxu0 0.0
    %1997 = vmatpush2.msra.mxu0 0.0
    %1998 = vmatprep.subr.mxu0 0.0
    %1999 = vmatpush2.msra.mxu0 0.0
    %2000 = vmatprep.subr.mxu0 0.0
    %2001 = vmatpush2.msra.mxu0 0.0
    %2002 = vmatprep.subr.mxu0 0.0
    %2003 = vmatpush2.msra.mxu0 0.0
    %2004 = vmatprep.subr.mxu0 0.0
    %2005 = vmatpush2.msra.mxu0 0.0
    %2006 = vmatprep.subr.mxu0 0.0
    %2007 = vmatpush2.msra.mxu0 0.0
    %2008 = vmatprep.subr.mxu0 0.0
    %2009 = vmatpush2.msra.mxu0 0.0
    %2010 = vmatprep.subr.mxu0 0.0
    %2011 = vmatpush2.msra.mxu0 0.0
    %2012 = vmatprep.subr.mxu0 0.0
    %2013 = vmatpush2.msra.mxu0 0.0
    %2014 = vmatprep.subr.mxu0 0.0
    %2015 = vmatpush2.msra.mxu0 0.0
    %2016 = vmatprep.subr.mxu0 0.0
    %2017 = vmatpush2.msra.mxu0 0.0
    %2018 = vmatprep.subr.mxu0 0.0
    %2019 = vmatpush2.msra.mxu0 0.0
    %2020 = vmatprep.subr.mxu0 0.0
    %2021 = vmatpush2.msra.mxu0 0.0
    %2022 = vmatprep.mubr.f32.mxu0 0.0
    %2023 = vmatmul.mubr.f32.gmra.mxu0 %v1679
    %v2024 = vpop.f32.mrf.mxu0
    %v2025 = vadd.f32 0.0, %v2024
    %v2026 = vpop.f32.mrf.mxu0
    %2027 = vdwg.mxu0
    %v2028 = vld [vmem:[%s10] sm:$0xff]
    %v2029 = vld [vmem:[%s10 + $0x8] sm:$0xff]
    %v2030 = vld [vmem:[%s10 + $0x10] sm:$0xff]
    %v2031 = vld [vmem:[%s10 + $0x18] sm:$0xff]
    %v2036 = vrot.slane %v1885, 7
    %vm2037 = vcmask 1041409
    %v2038 = vsel %vm2037, %v2036, %v1815
    %v2039 = vrot.slane %v1955, 6
    %vm2040 = vcmask 1042434
    %v2041 = vsel %vm2040, %v2039, %v2038
    %v2042 = vrot.slane %v2025, 5
    %vm2043 = vcmask 1043459
    %v2044 = vsel %vm2043, %v2042, %v2041
    %v2045 = vsel %vm81, %v2044, 0
    %2047 = vmatprep.subr.mxu0 0.0
    %2048 = vmatpush1.msra.mxu0 0.0
    %2049 = vmatprep.subr.mxu0 0.0
    %2050 = vmatpush1.msra.mxu0 0.0
    %2051 = vmatprep.subr.mxu0 0.0
    %2052 = vmatpush1.msra.mxu0 0.0
    %2053 = vmatprep.subr.mxu0 0.0
    %2054 = vmatpush1.msra.mxu0 0.0
    %2055 = vmatprep.subr.mxu0 0.0
    %2056 = vmatpush1.msra.mxu0 0.0
    %2057 = vmatprep.subr.mxu0 0.0
    %2058 = vmatpush1.msra.mxu0 0.0
    %2059 = vmatprep.subr.mxu0 0.0
    %2060 = vmatpush1.msra.mxu0 0.0
    %2061 = vmatprep.subr.mxu0 0.0
    %2062 = vmatpush1.msra.mxu0 0.0
    %2063 = vmatprep.subr.mxu0 0.0
    %2064 = vmatpush1.msra.mxu0 0.0
    %2065 = vmatprep.subr.mxu0 0.0
    %2066 = vmatpush1.msra.mxu0 0.0
    %2067 = vmatprep.subr.mxu0 0.0
    %2068 = vmatpush1.msra.mxu0 0.0
    %2069 = vmatprep.subr.mxu0 0.0
    %2070 = vmatpush1.msra.mxu0 0.0
    %2071 = vmatprep.subr.mxu0 0.0
    %2072 = vmatpush1.msra.mxu0 %v2031
    %2073 = vmatprep.subr.mxu0 0.0
    %2074 = vmatpush1.msra.mxu0 %v2030
    %2075 = vmatprep.subr.mxu0 0.0
    %2076 = vmatpush1.msra.mxu0 %v2029
    %2077 = vmatprep.subr.mxu0 0.0
    %2078 = vmatpush1.msra.mxu0 %v2028
    %2079 = vmatprep.subr.mxu0 0.0
    %2080 = vmatpush2.msra.mxu0 0.0
    %2081 = vmatprep.subr.mxu0 0.0
    %2082 = vmatpush2.msra.mxu0 0.0
    %2083 = vmatprep.subr.mxu0 0.0
    %2084 = vmatpush2.msra.mxu0 0.0
    %2085 = vmatprep.subr.mxu0 0.0
    %2086 = vmatpush2.msra.mxu0 0.0
    %2087 = vmatprep.subr.mxu0 0.0
    %2088 = vmatpush2.msra.mxu0 0.0
    %2089 = vmatprep.subr.mxu0 0.0
    %2090 = vmatpush2.msra.mxu0 0.0
    %2091 = vmatprep.subr.mxu0 0.0
    %2092 = vmatpush2.msra.mxu0 0.0
    %2093 = vmatprep.subr.mxu0 0.0
    %2094 = vmatpush2.msra.mxu0 0.0
    %2095 = vmatprep.subr.mxu0 0.0
    %2096 = vmatpush2.msra.mxu0 0.0
    %2097 = vmatprep.subr.mxu0 0.0
    %2098 = vmatpush2.msra.mxu0 0.0
    %2099 = vmatprep.subr.mxu0 0.0
    %2100 = vmatpush2.msra.mxu0 0.0
    %2101 = vmatprep.subr.mxu0 0.0
    %2102 = vmatpush2.msra.mxu0 0.0
    %2103 = vmatprep.subr.mxu0 0.0
    %2104 = vmatpush2.msra.mxu0 0.0
    %2105 = vmatprep.subr.mxu0 0.0
    %2106 = vmatpush2.msra.mxu0 0.0
    %2107 = vmatprep.subr.mxu0 0.0
    %2108 = vmatpush2.msra.mxu0 0.0
    %2109 = vmatprep.subr.mxu0 0.0
    %2110 = vmatpush2.msra.mxu0 0.0
    %2111 = vmatprep.mubr.f32.mxu0 0.0
    %2112 = vmatmul.mubr.f32.gmra.mxu0 %v2045
    %v2113 = vpop.f32.mrf.mxu0
    %v2114 = vadd.f32 %v225, %v2113
    %v2115 = vpop.f32.mrf.mxu0
    %2116 = vdwg.mxu0
    %v2117 = vld [vmem:[%s11] sm:$0x1]
    %v2119 = vlaneseq
    %v2120 = vshrl.u32 %v2119, 7
    %v2121 = vsub.s32 0, %v2120
    %v2122 = vrot.slane %v2117, %v2121
    %v2124 = vadd.f32 %v2114, %v2122
    %v2125 = vtanh.pop %v2124
    %v2128 = vunpack.c.l.s4 1966171168
    %v2129 = vunpack.c.0.s8 %v2128
    %v2130 = vlaneseq
    %v2131 = vshrl.u32 %v2130, 7
    %v2132 = vsub.s32 %v2129, %v2131
    %v2133 = vrot.slane %v2125, %v2132
    %v2134 = vcombine.high %v2133, %v2133
    %v2136 = vunpack.c.l.s4 1966171168
    %v2137 = vunpack.c.0.s8 %v2136
    %v2138 = vlaneseq
    %v2139 = vshrl.u32 %v2138, 7
    %v2140 = vsub.s32 %v2137, %v2139
    %v2141 = vrot.slane %v2133, %v2140
    %v2143 = vunpack.c.l.s4 1966171168
    %v2144 = vunpack.c.0.s8 %v2143
    %v2145 = vlaneseq
    %v2146 = vshrl.u32 %v2145, 7
    %v2147 = vsub.s32 %v2144, %v2146
    %v2148 = vrot.slane %v2134, %v2147
    %v2149 = vcombine.high %v2141, %v2141
    %v2150 = vcombine.high %v2148, %v2148
    %vm2155 = vcmask 253952
    %2156 = vst.msk [vmem:[#allocation2] sm:$0x1] %vm2155, %v2141
    %2157 = vst.msk [vmem:[#allocation2 + $0x1] sm:$0x1] %vm2155, %v2148
    %2158 = vst.msk [vmem:[#allocation2 + $0x2] sm:$0x1] %vm2155, %v2149
    %2159 = vst.msk [vmem:[#allocation2 + $0x3] sm:$0x1] %vm2155, %v2150
    %2160 = vst [vmem:[%s13] sm:$0x1] %v1676
    %2161 = vst [vmem:[%s13 + $0x1] sm:$0x1] %v1677
    %2162 = vst [vmem:[%s13 + $0x2] sm:$0x1] %v1678
    %2163 = vst [vmem:[%s13 + $0x3] sm:$0x1] %v1679
    %2164 = vst [vmem:[%s14] sm:$0x1] %v1680
    %2165 = vst [vmem:[%s14 + $0x1] sm:$0x1] %v1681
    %2166 = vst [vmem:[%s14 + $0x2] sm:$0x1] %v1682
    %2167 = vst [vmem:[%s14 + $0x3] sm:$0x1] %v1683
    // Predicated region
    $region50: #{sentence_attention_steps.1} parent=1 // pred_check
      _
    $region51: #{sentence_attention_steps.1} parent=1 // pred_check_branch
      %2169 = sbr.rel (0) target = $region53
    $region52: #{sentence_attention_steps.1} parent=1 // pred_region
      %s2171 = ssub.s32 64, 64
      %2172 = vsyncadd [#allocation3], %s2171
      %s2173 = sshll.u32 [#allocation2], 4
      %s2174 = int_to_ptr.vmem [resolvable:$true] %s2173
      %2179 = dma.vmem_to_hbm [thread:$0]  %s2174, 64, %s12, [#allocation3], 16, 16, 1
    $region53: #{sentence_attention_steps.1} parent=1 // pred_fallthru
      _
    // Predicated region
    $region54: #{sentence_attention_steps.1} parent=1 // pred_check
      _
    $region55: #{sentence_attention_steps.1} parent=1 // pred_check_branch
      %2181 = sbr.rel (0) target = $region57
    $region56: #{sentence_attention_steps.1} parent=1 // pred_region
      _
    $region57: #{sentence_attention_steps.1} parent=1 // pred_fallthru
      _
    // Predicated region
    $region58: #{sentence_attention_steps.1} parent=1 // pred_check
      _
    $region59: #{sentence_attention_steps.1} parent=1 // pred_check_branch
      %2183 = sbr.rel (0) target = $region61
    $region60: #{sentence_attention_steps.1} parent=1 // pred_region
      _
    $region61: #{sentence_attention_steps.1} parent=1 // pred_fallthru
      _
    // Predicated region
    $region62: #{sentence_attention_steps.1} parent=1 // pred_check
      _
    $region63: #{sentence_attention_steps.1} parent=1 // pred_check_branch
      %2185 = sbr.rel (0) target = $region65
    $region64: #{sentence_attention_steps.1} parent=1 // pred_region
      %2186 = dma.done [#allocation3], 64
    $region65: #{sentence_attention_steps.1} parent=1 // pred_fallthru
      _
    // Predicated region
    $region66: #{sentence_attention_steps.1} parent=1 // pred_check
      _
    $region67: #{sentence_attention_steps.1} parent=1 // pred_check_branch
      %2188 = sbr.rel (0) target = $region69
    $region68: #{sentence_attention_steps.1} parent=1 // pred_region
      _
    $region69: #{sentence_attention_steps.1} parent=1 // pred_fallthru
      _
    // Predicated region
    $region70: #{sentence_attention_steps.1} parent=1 // pred_check
      _
    $region71: #{sentence_attention_steps.1} parent=1 // pred_check_branch
      %2190 = sbr.rel (0) target = $region73
    $region72: #{sentence_attention_steps.1} parent=1 // pred_region
      _
    $region73: #{sentence_attention_steps.1} parent=1 // pred_fallthru
      _
    %2191 = vsyncpa [#allocation3], 1

</llo_original>
